<compile_context>
chip_gen: v5e
topology: v5e:2x2
jax: 0.10.0
libtpu: 0.0.40
codegen_flags: <defaults>
</compile_context>

<pallas_src>
import jax
import jax.numpy as jnp
from jax.experimental import pallas as pl
from jax.experimental.pallas import tpu as pltpu


def esf_kernel(x_ref,                 # (T, B, I) time-major
               wbig_ref,              # (I+2H, 8H) block weight (see header)
               bcat_ref,              # (1, 8H) = [b0 | b1]
               w1_ref,                # (2H, 4H) = [wih1; whh1] (epilogue only)
               gamma_ref, beta_ref,   # (1, H), (1, H)
               wfc_ref, bfc_ref,      # (H, A), (1, A)
               out_ref):              # (B, A)
    T, B, I = x_ref.shape
    H = w1_ref.shape[0] // 2
    G = 4 * H

    wbig = wbig_ref[...]
    w1 = w1_ref[...]

    # Hoisted bias broadcast (JAX does not CSE broadcast_in_dim).
    bcat_b = jnp.zeros((B, 2 * G), jnp.float32) + bcat_ref[...]   # (B, 8H)
    b0_b = bcat_b[:, 0:G]
    b1_b = bcat_b[:, G:]

    # Pre-load all x blocks: recurrence-independent, keeps them off the serial chain.
    x_blk = [x_ref[t] for t in range(T)]                          # each (B, I)

    def cell(sig, th, base, c):
        # PyTorch gate order i, f, g, o inside each 4H half of the wide result.
        i = sig[:, base:base + H]
        f = sig[:, base + H:base + 2 * H]
        g = th[:, base + 2 * H:base + 3 * H]
        o = sig[:, base + 3 * H:base + 4 * H]
        c_new = f * c + i * g
        h_new = o * jnp.tanh(c_new)
        return h_new, c_new

    zeros = jnp.zeros((B, H), jnp.float32)

    # ---- Prologue: layer-0 gates for step 0 (h0(-1) == 0, no recurrent term). ----
    wih0 = wbig[0:I, 0:G]
    g0 = jnp.dot(x_blk[0], wih0, preferred_element_type=jnp.float32) + b0_b
    sig = jax.nn.sigmoid(g0)
    th = jnp.tanh(g0)
    h0, c0 = cell(sig, th, 0, zeros)          # layer-0 state for step 0
    h1, c1 = zeros, zeros                     # layer-1 state (not yet run)

    # ---- Main loop, s = 0 .. T-2 (static unroll): one block matmul + one wide
    #      sigmoid + one wide tanh per step, covering BOTH cells. ----
    for s in range(T - 1):
        lhs = jnp.concatenate([x_blk[s + 1], h0, h1], axis=-1)    # (B, I+2H)
        gates = jnp.dot(lhs, wbig, preferred_element_type=jnp.float32) + bcat_b
        sig = jax.nn.sigmoid(gates)           # covers i, f, o of both layers
        th = jnp.tanh(gates)                  # covers g of both layers
        h0, c0 = cell(sig, th, 0, c0)         # layer-0, step s+1
        h1, c1 = cell(sig, th, G, c1)         # layer-1, step s

    # ---- Epilogue: layer-1 gates for the final step T-1. ----
    hc = jnp.concatenate([h0, h1], axis=-1)                       # (B, 2H)
    g1 = jnp.dot(hc, w1, preferred_element_type=jnp.float32) + b1_b
    sig = jax.nn.sigmoid(g1)
    th = jnp.tanh(g1)
    h1, c1 = cell(sig, th, 0, c1)

    h_t = h1                                  # == h_n[-1]

    # LayerNorm over hidden dim (eps = 1e-5, nn.LayerNorm default).
    mean = jnp.mean(h_t, axis=-1, keepdims=True)
    var = jnp.mean((h_t - mean) ** 2, axis=-1, keepdims=True)
    h_ln = (h_t - mean) * jax.lax.rsqrt(var + 1e-5)
    h_ln = h_ln * gamma_ref[...] + beta_ref[...]

    # Dropout in eval mode is identity; final Linear.
    out = jnp.dot(h_ln, wfc_ref[...], preferred_element_type=jnp.float32) + bfc_ref[...]
    out_ref[...] = out.astype(out_ref.dtype)


def _cost_estimate(T, B, I, H, A):
    G = 4 * H
    K = I + 2 * H
    flops = (2 * B * I * G                     # prologue layer-0 matmul
             + (T - 1) * 2 * B * K * (2 * G)   # per-step combined block matmul
             + 2 * B * (2 * H) * G             # epilogue layer-1 matmul
             + 2 * B * H * A                   # final fc
             + 24 * T * B * G)                 # gate combines / LayerNorm (rough)
    transcendentals = T * B * (4 * G + 2 * H)  # wide sigmoid+tanh + tanh(c), both cells
    bytes_accessed = 4 * (T * B * I + K * 2 * G + 2 * G + 2 * H * G
                          + 2 * H + H * A + A + B * A)
    return pl.CostEstimate(flops=int(flops),
                           transcendentals=int(transcendentals),
                           bytes_accessed=int(bytes_accessed))


def enable_state_model_forward(x, params):
    """x: (B, T, input_size) batch_first, like the PyTorch module (eval mode)."""
    B, T, I = x.shape
    H = params["whh0"].shape[0]
    A = params["wfc"].shape[1]
    G = 4 * H

    # Pad batch to a full sublane tile (multiple of 8): essentially free on
    # MXU/EUP/VPU and keeps every per-step slice sublane-aligned.
    B_pad = max(8, ((B + 7) // 8) * 8)
    x_tm = jnp.transpose(x, (1, 0, 2))                     # time-major (T, B, I)
    if B_pad != B:
        x_tm = jnp.pad(x_tm, ((0, 0), (0, B_pad - B), (0, 0)))

    # Block weight so the kernel issues ONE matmul per step producing
    # [gates0(s+1) | gates1(s)].
    zI = jnp.zeros((I, G), jnp.float32)
    zH = jnp.zeros((H, G), jnp.float32)
    wbig = jnp.concatenate([
        jnp.concatenate([params["wih0"], zI], axis=1),                 # x rows
        jnp.concatenate([params["whh0"], params["wih1"]], axis=1),     # h0 rows
        jnp.concatenate([zH, params["whh1"]], axis=1),                 # h1 rows
    ], axis=0)                                                          # (I+2H, 8H)
    bcat = jnp.concatenate([params["b0"], params["b1"]], axis=1)       # (1, 8H)
    w1 = jnp.concatenate([params["wih1"], params["whh1"]], axis=0)     # (2H, 4H)

    # NOTE: all math kept in f32 to preserve exact PyTorch eval semantics.
    # TODO(synk): optional bf16 MXU operands (f32 accumulation) on v6e/v7x; requires
    # relaxing the 1e-4 tolerance vs the f32 reference.
    # TODO(synk): for large serving batches, add a "parallel" batch-tile grid axis
    # (BlockSpecs + dimension_semantics) so v7x's second TensorCore is used.
    vmem = pl.BlockSpec(memory_space=pltpu.MemorySpace.VMEM)
    args = (x_tm, wbig, bcat, w1,
            params["gamma"], params["beta"], params["wfc"], params["bfc"])
    out = pl.pallas_call(
        esf_kernel,
        out_shape=jax.ShapeDtypeStruct((B_pad, A), jnp.float32),
        in_specs=[vmem] * len(args),
        out_specs=vmem,
        cost_estimate=_cost_estimate(T, B_pad, I, H, A),
    )(*args)
    return out[:B]


def make_params(key, input_size, hidden_size, num_activities):
    """Deterministic synthetic parameters (PyTorch-style uniform init)."""
    H = hidden_size
    k = 1.0 / jnp.sqrt(jnp.float32(H))
    keys = jax.random.split(key, 12)

    def u(k_, shape):
        return jax.random.uniform(k_, shape, jnp.float32, -k, k)

    # Layer 0
    wih0 = u(keys[0], (input_size, 4 * H))                  # transposed weight_ih_l0
    whh0 = u(keys[1], (H, 4 * H))                           # transposed weight_hh_l0
    b0 = u(keys[2], (1, 4 * H)) + u(keys[3], (1, 4 * H))    # bias_ih + bias_hh
    # Layer 1
    wih1 = u(keys[4], (H, 4 * H))
    whh1 = u(keys[5], (H, 4 * H))
    b1 = u(keys[6], (1, 4 * H)) + u(keys[7], (1, 4 * H))
    # LayerNorm
    gamma = jnp.ones((1, H), jnp.float32)
    beta = jnp.zeros((1, H), jnp.float32)
    # Linear fc
    kf = 1.0 / jnp.sqrt(jnp.float32(H))
    wfc = jax.random.uniform(keys[8], (H, num_activities), jnp.float32, -kf, kf)
    bfc = jax.random.uniform(keys[9], (1, num_activities), jnp.float32, -kf, kf)

    return dict(wih0=wih0, whh0=whh0, b0=b0,
                wih1=wih1, whh1=whh1, b1=b1,
                gamma=gamma, beta=beta, wfc=wfc, bfc=bfc)


def reference_forward(x, params):
    """Pure-JAX reference implementing the same math (prefix_mask=None path)."""
    H = params["whh0"].shape[0]

    def cell(x_t, h, c, wih, whh, b):
        g = x_t @ wih + h @ whh + b
        i = jax.nn.sigmoid(g[:, 0:H])
        f = jax.nn.sigmoid(g[:, H:2 * H])
        gg = jnp.tanh(g[:, 2 * H:3 * H])
        o = jax.nn.sigmoid(g[:, 3 * H:4 * H])
        c = f * c + i * gg
        h = o * jnp.tanh(c)
        return h, c

    B = x.shape[0]
    z = jnp.zeros((B, H), jnp.float32)

    def scan_fn(carry, x_t):
        h0, c0, h1, c1 = carry
        h0, c0 = cell(x_t, h0, c0, params["wih0"], params["whh0"], params["b0"])
        h1, c1 = cell(h0, h1, c1, params["wih1"], params["whh1"], params["b1"])
        return (h0, c0, h1, c1), None

    (h0, c0, h1, c1), _ = jax.lax.scan(scan_fn, (z, z, z, z),
                                       jnp.transpose(x, (1, 0, 2)))
    h_t = h1
    mean = jnp.mean(h_t, axis=-1, keepdims=True)
    var = jnp.mean((h_t - mean) ** 2, axis=-1, keepdims=True)
    h_ln = (h_t - mean) / jnp.sqrt(var + 1e-5)
    h_ln = h_ln * params["gamma"] + params["beta"]
    return h_ln @ params["wfc"] + params["bfc"]


if __name__ == "__main__":
    # Small shapes consistent with the module's forward (batch_first LSTM input).
    B, T, input_size, hidden_size, num_activities = 2, 8, 8, 32, 8

    key = jax.random.PRNGKey(0)
    kx, kp = jax.random.split(key)
    x = jax.random.normal(kx, (B, T, input_size), jnp.float32)
    params = make_params(kp, input_size, hidden_size, num_activities)

    out = enable_state_model_forward(x, params)
    out = jax.block_until_ready(out)

    ref = reference_forward(x, params)
    assert out.shape == (B, num_activities)
    assert jnp.allclose(out, ref, atol=1e-4, rtol=1e-4), "mismatch vs JAX reference"

    # TODO(synk): prefix_mask / pack_padded_sequence path not implemented
    # (only the prefix_mask=None branch, i.e. h_n[-1], is reproduced).
    print("KERNEL_OK")
</pallas_src>

<mosaic_0001>
module attributes {stable_mosaic.version = 11 : i64} {
  func.func @esf_kernel(%arg0: memref<8x8x8xf32, #tpu.memory_space<vmem>>, %arg1: memref<72x256xf32, #tpu.memory_space<vmem>>, %arg2: memref<1x256xf32, #tpu.memory_space<vmem>>, %arg3: memref<64x128xf32, #tpu.memory_space<vmem>>, %arg4: memref<1x32xf32, #tpu.memory_space<vmem>>, %arg5: memref<1x32xf32, #tpu.memory_space<vmem>>, %arg6: memref<32x8xf32, #tpu.memory_space<vmem>>, %arg7: memref<1x8xf32, #tpu.memory_space<vmem>>, %arg8: memref<8x8xf32, #tpu.memory_space<vmem>>) attributes {dimension_semantics = [], scalar_prefetch = 0 : i64, scratch_operands = 0 : i64, tpu.core_type = #tpu.core_type<tc>} {
    %c0 = arith.constant 0 : index
    %c0_0 = arith.constant 0 : index
    %0 = vector.load %arg1[%c0, %c0_0] : memref<72x256xf32, #tpu.memory_space<vmem>>, vector<72x256xf32>
    %c0_1 = arith.constant 0 : index
    %c0_2 = arith.constant 0 : index
    %1 = vector.load %arg3[%c0_1, %c0_2] : memref<64x128xf32, #tpu.memory_space<vmem>>, vector<64x128xf32>
    %cst = arith.constant 0.000000e+00 : f32
    %2 = vector.broadcast %cst : f32 to vector<8x256xf32>
    %c0_3 = arith.constant 0 : index
    %c0_4 = arith.constant 0 : index
    %3 = vector.load %arg2[%c0_3, %c0_4] : memref<1x256xf32, #tpu.memory_space<vmem>>, vector<1x256xf32>
    %4 = vector.broadcast %3 : vector<1x256xf32> to vector<8x256xf32>
    %5 = arith.addf %2, %4 : vector<8x256xf32>
    %6 = vector.extract_strided_slice %5 {offsets = [0, 0], sizes = [8, 128], strides = [1, 1]} : vector<8x256xf32> to vector<8x128xf32>
    %7 = vector.extract_strided_slice %5 {offsets = [0, 128], sizes = [8, 128], strides = [1, 1]} : vector<8x256xf32> to vector<8x128xf32>
    %c0_5 = arith.constant 0 : index
    %c0_6 = arith.constant 0 : index
    %c0_7 = arith.constant 0 : index
    %8 = vector.load %arg0[%c0_5, %c0_6, %c0_7] : memref<8x8x8xf32, #tpu.memory_space<vmem>>, vector<1x8x8xf32>
    %9 = vector.shape_cast %8 : vector<1x8x8xf32> to vector<8x8xf32>
    %c1 = arith.constant 1 : index
    %c0_8 = arith.constant 0 : index
    %c0_9 = arith.constant 0 : index
    %10 = vector.load %arg0[%c1, %c0_8, %c0_9] : memref<8x8x8xf32, #tpu.memory_space<vmem>>, vector<1x8x8xf32>
    %11 = vector.shape_cast %10 : vector<1x8x8xf32> to vector<8x8xf32>
    %c2 = arith.constant 2 : index
    %c0_10 = arith.constant 0 : index
    %c0_11 = arith.constant 0 : index
    %12 = vector.load %arg0[%c2, %c0_10, %c0_11] : memref<8x8x8xf32, #tpu.memory_space<vmem>>, vector<1x8x8xf32>
    %13 = vector.shape_cast %12 : vector<1x8x8xf32> to vector<8x8xf32>
    %c3 = arith.constant 3 : index
    %c0_12 = arith.constant 0 : index
    %c0_13 = arith.constant 0 : index
    %14 = vector.load %arg0[%c3, %c0_12, %c0_13] : memref<8x8x8xf32, #tpu.memory_space<vmem>>, vector<1x8x8xf32>
    %15 = vector.shape_cast %14 : vector<1x8x8xf32> to vector<8x8xf32>
    %c4 = arith.constant 4 : index
    %c0_14 = arith.constant 0 : index
    %c0_15 = arith.constant 0 : index
    %16 = vector.load %arg0[%c4, %c0_14, %c0_15] : memref<8x8x8xf32, #tpu.memory_space<vmem>>, vector<1x8x8xf32>
    %17 = vector.shape_cast %16 : vector<1x8x8xf32> to vector<8x8xf32>
    %c5 = arith.constant 5 : index
    %c0_16 = arith.constant 0 : index
    %c0_17 = arith.constant 0 : index
    %18 = vector.load %arg0[%c5, %c0_16, %c0_17] : memref<8x8x8xf32, #tpu.memory_space<vmem>>, vector<1x8x8xf32>
    %19 = vector.shape_cast %18 : vector<1x8x8xf32> to vector<8x8xf32>
    %c6 = arith.constant 6 : index
    %c0_18 = arith.constant 0 : index
    %c0_19 = arith.constant 0 : index
    %20 = vector.load %arg0[%c6, %c0_18, %c0_19] : memref<8x8x8xf32, #tpu.memory_space<vmem>>, vector<1x8x8xf32>
    %21 = vector.shape_cast %20 : vector<1x8x8xf32> to vector<8x8xf32>
    %c7 = arith.constant 7 : index
    %c0_20 = arith.constant 0 : index
    %c0_21 = arith.constant 0 : index
    %22 = vector.load %arg0[%c7, %c0_20, %c0_21] : memref<8x8x8xf32, #tpu.memory_space<vmem>>, vector<1x8x8xf32>
    %23 = vector.shape_cast %22 : vector<1x8x8xf32> to vector<8x8xf32>
    %cst_22 = arith.constant 0.000000e+00 : f32
    %24 = vector.broadcast %cst_22 : f32 to vector<8x32xf32>
    %25 = vector.extract_strided_slice %0 {offsets = [0, 0], sizes = [8, 128], strides = [1, 1]} : vector<72x256xf32> to vector<8x128xf32>
    %cst_23 = arith.constant dense<0.000000e+00> : vector<8x128xf32>
    %26 = tpu.matmul %9, %25, %cst_23 {dimension_numbers = #tpu.dot_dimension_numbers<[1], [0], [0], [1], [0, 0, 1, 1], [], []>} : vector<8x8xf32>, vector<8x128xf32>, vector<8x128xf32> -> vector<8x128xf32>
    %27 = arith.addf %26, %6 : vector<8x128xf32>
    %28 = arith.negf %27 : vector<8x128xf32>
    %29 = math.exp %28 : vector<8x128xf32>
    %cst_24 = arith.constant 1.000000e+00 : f32
    %30 = vector.broadcast %cst_24 : f32 to vector<8x128xf32>
    %31 = arith.addf %30, %29 : vector<8x128xf32>
    %32 = arith.divf %30, %31 : vector<8x128xf32>
    %33 = math.tanh %27 : vector<8x128xf32>
    %34 = vector.extract_strided_slice %32 {offsets = [0, 0], sizes = [8, 32], strides = [1, 1]} : vector<8x128xf32> to vector<8x32xf32>
    %35 = vector.extract_strided_slice %32 {offsets = [0, 32], sizes = [8, 32], strides = [1, 1]} : vector<8x128xf32> to vector<8x32xf32>
    %36 = vector.extract_strided_slice %33 {offsets = [0, 64], sizes = [8, 32], strides = [1, 1]} : vector<8x128xf32> to vector<8x32xf32>
    %37 = vector.extract_strided_slice %32 {offsets = [0, 96], sizes = [8, 32], strides = [1, 1]} : vector<8x128xf32> to vector<8x32xf32>
    %38 = arith.mulf %35, %24 : vector<8x32xf32>
    %39 = arith.mulf %34, %36 : vector<8x32xf32>
    %40 = arith.addf %38, %39 : vector<8x32xf32>
    %41 = math.tanh %40 : vector<8x32xf32>
    %42 = arith.mulf %37, %41 : vector<8x32xf32>
    %43 = tpu.concatenate %11, %42, %24 in 1 : vector<8x8xf32>, vector<8x32xf32>, vector<8x32xf32> -> vector<8x72xf32>
    %cst_25 = arith.constant dense<0.000000e+00> : vector<8x256xf32>
    %44 = tpu.matmul %43, %0, %cst_25 {dimension_numbers = #tpu.dot_dimension_numbers<[1], [0], [0], [1], [0, 0, 1, 1], [], []>} : vector<8x72xf32>, vector<72x256xf32>, vector<8x256xf32> -> vector<8x256xf32>
    %45 = arith.addf %44, %5 : vector<8x256xf32>
    %46 = arith.negf %45 : vector<8x256xf32>
    %47 = math.exp %46 : vector<8x256xf32>
    %cst_26 = arith.constant 1.000000e+00 : f32
    %48 = vector.broadcast %cst_26 : f32 to vector<8x256xf32>
    %49 = arith.addf %48, %47 : vector<8x256xf32>
    %50 = arith.divf %48, %49 : vector<8x256xf32>
    %51 = math.tanh %45 : vector<8x256xf32>
    %52 = vector.extract_strided_slice %50 {offsets = [0, 0], sizes = [8, 32], strides = [1, 1]} : vector<8x256xf32> to vector<8x32xf32>
    %53 = vector.extract_strided_slice %50 {offsets = [0, 32], sizes = [8, 32], strides = [1, 1]} : vector<8x256xf32> to vector<8x32xf32>
    %54 = vector.extract_strided_slice %51 {offsets = [0, 64], sizes = [8, 32], strides = [1, 1]} : vector<8x256xf32> to vector<8x32xf32>
    %55 = vector.extract_strided_slice %50 {offsets = [0, 96], sizes = [8, 32], strides = [1, 1]} : vector<8x256xf32> to vector<8x32xf32>
    %56 = arith.mulf %53, %40 : vector<8x32xf32>
    %57 = arith.mulf %52, %54 : vector<8x32xf32>
    %58 = arith.addf %56, %57 : vector<8x32xf32>
    %59 = math.tanh %58 : vector<8x32xf32>
    %60 = arith.mulf %55, %59 : vector<8x32xf32>
    %61 = vector.extract_strided_slice %50 {offsets = [0, 128], sizes = [8, 32], strides = [1, 1]} : vector<8x256xf32> to vector<8x32xf32>
    %62 = vector.extract_strided_slice %50 {offsets = [0, 160], sizes = [8, 32], strides = [1, 1]} : vector<8x256xf32> to vector<8x32xf32>
    %63 = vector.extract_strided_slice %51 {offsets = [0, 192], sizes = [8, 32], strides = [1, 1]} : vector<8x256xf32> to vector<8x32xf32>
    %64 = vector.extract_strided_slice %50 {offsets = [0, 224], sizes = [8, 32], strides = [1, 1]} : vector<8x256xf32> to vector<8x32xf32>
    %65 = arith.mulf %62, %24 : vector<8x32xf32>
    %66 = arith.mulf %61, %63 : vector<8x32xf32>
    %67 = arith.addf %65, %66 : vector<8x32xf32>
    %68 = math.tanh %67 : vector<8x32xf32>
    %69 = arith.mulf %64, %68 : vector<8x32xf32>
    %70 = tpu.concatenate %13, %60, %69 in 1 : vector<8x8xf32>, vector<8x32xf32>, vector<8x32xf32> -> vector<8x72xf32>
    %cst_27 = arith.constant dense<0.000000e+00> : vector<8x256xf32>
    %71 = tpu.matmul %70, %0, %cst_27 {dimension_numbers = #tpu.dot_dimension_numbers<[1], [0], [0], [1], [0, 0, 1, 1], [], []>} : vector<8x72xf32>, vector<72x256xf32>, vector<8x256xf32> -> vector<8x256xf32>
    %72 = arith.addf %71, %5 : vector<8x256xf32>
    %73 = arith.negf %72 : vector<8x256xf32>
    %74 = math.exp %73 : vector<8x256xf32>
    %cst_28 = arith.constant 1.000000e+00 : f32
    %75 = vector.broadcast %cst_28 : f32 to vector<8x256xf32>
    %76 = arith.addf %75, %74 : vector<8x256xf32>
    %77 = arith.divf %75, %76 : vector<8x256xf32>
    %78 = math.tanh %72 : vector<8x256xf32>
    %79 = vector.extract_strided_slice %77 {offsets = [0, 0], sizes = [8, 32], strides = [1, 1]} : vector<8x256xf32> to vector<8x32xf32>
    %80 = vector.extract_strided_slice %77 {offsets = [0, 32], sizes = [8, 32], strides = [1, 1]} : vector<8x256xf32> to vector<8x32xf32>
    %81 = vector.extract_strided_slice %78 {offsets = [0, 64], sizes = [8, 32], strides = [1, 1]} : vector<8x256xf32> to vector<8x32xf32>
    %82 = vector.extract_strided_slice %77 {offsets = [0, 96], sizes = [8, 32], strides = [1, 1]} : vector<8x256xf32> to vector<8x32xf32>
    %83 = arith.mulf %80, %58 : vector<8x32xf32>
    %84 = arith.mulf %79, %81 : vector<8x32xf32>
    %85 = arith.addf %83, %84 : vector<8x32xf32>
    %86 = math.tanh %85 : vector<8x32xf32>
    %87 = arith.mulf %82, %86 : vector<8x32xf32>
    %88 = vector.extract_strided_slice %77 {offsets = [0, 128], sizes = [8, 32], strides = [1, 1]} : vector<8x256xf32> to vector<8x32xf32>
    %89 = vector.extract_strided_slice %77 {offsets = [0, 160], sizes = [8, 32], strides = [1, 1]} : vector<8x256xf32> to vector<8x32xf32>
    %90 = vector.extract_strided_slice %78 {offsets = [0, 192], sizes = [8, 32], strides = [1, 1]} : vector<8x256xf32> to vector<8x32xf32>
    %91 = vector.extract_strided_slice %77 {offsets = [0, 224], sizes = [8, 32], strides = [1, 1]} : vector<8x256xf32> to vector<8x32xf32>
    %92 = arith.mulf %89, %67 : vector<8x32xf32>
    %93 = arith.mulf %88, %90 : vector<8x32xf32>
    %94 = arith.addf %92, %93 : vector<8x32xf32>
    %95 = math.tanh %94 : vector<8x32xf32>
    %96 = arith.mulf %91, %95 : vector<8x32xf32>
    %97 = tpu.concatenate %15, %87, %96 in 1 : vector<8x8xf32>, vector<8x32xf32>, vector<8x32xf32> -> vector<8x72xf32>
    %cst_29 = arith.constant dense<0.000000e+00> : vector<8x256xf32>
    %98 = tpu.matmul %97, %0, %cst_29 {dimension_numbers = #tpu.dot_dimension_numbers<[1], [0], [0], [1], [0, 0, 1, 1], [], []>} : vector<8x72xf32>, vector<72x256xf32>, vector<8x256xf32> -> vector<8x256xf32>
    %99 = arith.addf %98, %5 : vector<8x256xf32>
    %100 = arith.negf %99 : vector<8x256xf32>
    %101 = math.exp %100 : vector<8x256xf32>
    %cst_30 = arith.constant 1.000000e+00 : f32
    %102 = vector.broadcast %cst_30 : f32 to vector<8x256xf32>
    %103 = arith.addf %102, %101 : vector<8x256xf32>
    %104 = arith.divf %102, %103 : vector<8x256xf32>
    %105 = math.tanh %99 : vector<8x256xf32>
    %106 = vector.extract_strided_slice %104 {offsets = [0, 0], sizes = [8, 32], strides = [1, 1]} : vector<8x256xf32> to vector<8x32xf32>
    %107 = vector.extract_strided_slice %104 {offsets = [0, 32], sizes = [8, 32], strides = [1, 1]} : vector<8x256xf32> to vector<8x32xf32>
    %108 = vector.extract_strided_slice %105 {offsets = [0, 64], sizes = [8, 32], strides = [1, 1]} : vector<8x256xf32> to vector<8x32xf32>
    %109 = vector.extract_strided_slice %104 {offsets = [0, 96], sizes = [8, 32], strides = [1, 1]} : vector<8x256xf32> to vector<8x32xf32>
    %110 = arith.mulf %107, %85 : vector<8x32xf32>
    %111 = arith.mulf %106, %108 : vector<8x32xf32>
    %112 = arith.addf %110, %111 : vector<8x32xf32>
    %113 = math.tanh %112 : vector<8x32xf32>
    %114 = arith.mulf %109, %113 : vector<8x32xf32>
    %115 = vector.extract_strided_slice %104 {offsets = [0, 128], sizes = [8, 32], strides = [1, 1]} : vector<8x256xf32> to vector<8x32xf32>
    %116 = vector.extract_strided_slice %104 {offsets = [0, 160], sizes = [8, 32], strides = [1, 1]} : vector<8x256xf32> to vector<8x32xf32>
    %117 = vector.extract_strided_slice %105 {offsets = [0, 192], sizes = [8, 32], strides = [1, 1]} : vector<8x256xf32> to vector<8x32xf32>
    %118 = vector.extract_strided_slice %104 {offsets = [0, 224], sizes = [8, 32], strides = [1, 1]} : vector<8x256xf32> to vector<8x32xf32>
    %119 = arith.mulf %116, %94 : vector<8x32xf32>
    %120 = arith.mulf %115, %117 : vector<8x32xf32>
    %121 = arith.addf %119, %120 : vector<8x32xf32>
    %122 = math.tanh %121 : vector<8x32xf32>
    %123 = arith.mulf %118, %122 : vector<8x32xf32>
    %124 = tpu.concatenate %17, %114, %123 in 1 : vector<8x8xf32>, vector<8x32xf32>, vector<8x32xf32> -> vector<8x72xf32>
    %cst_31 = arith.constant dense<0.000000e+00> : vector<8x256xf32>
    %125 = tpu.matmul %124, %0, %cst_31 {dimension_numbers = #tpu.dot_dimension_numbers<[1], [0], [0], [1], [0, 0, 1, 1], [], []>} : vector<8x72xf32>, vector<72x256xf32>, vector<8x256xf32> -> vector<8x256xf32>
    %126 = arith.addf %125, %5 : vector<8x256xf32>
    %127 = arith.negf %126 : vector<8x256xf32>
    %128 = math.exp %127 : vector<8x256xf32>
    %cst_32 = arith.constant 1.000000e+00 : f32
    %129 = vector.broadcast %cst_32 : f32 to vector<8x256xf32>
    %130 = arith.addf %129, %128 : vector<8x256xf32>
    %131 = arith.divf %129, %130 : vector<8x256xf32>
    %132 = math.tanh %126 : vector<8x256xf32>
    %133 = vector.extract_strided_slice %131 {offsets = [0, 0], sizes = [8, 32], strides = [1, 1]} : vector<8x256xf32> to vector<8x32xf32>
    %134 = vector.extract_strided_slice %131 {offsets = [0, 32], sizes = [8, 32], strides = [1, 1]} : vector<8x256xf32> to vector<8x32xf32>
    %135 = vector.extract_strided_slice %132 {offsets = [0, 64], sizes = [8, 32], strides = [1, 1]} : vector<8x256xf32> to vector<8x32xf32>
    %136 = vector.extract_strided_slice %131 {offsets = [0, 96], sizes = [8, 32], strides = [1, 1]} : vector<8x256xf32> to vector<8x32xf32>
    %137 = arith.mulf %134, %112 : vector<8x32xf32>
    %138 = arith.mulf %133, %135 : vector<8x32xf32>
    %139 = arith.addf %137, %138 : vector<8x32xf32>
    %140 = math.tanh %139 : vector<8x32xf32>
    %141 = arith.mulf %136, %140 : vector<8x32xf32>
    %142 = vector.extract_strided_slice %131 {offsets = [0, 128], sizes = [8, 32], strides = [1, 1]} : vector<8x256xf32> to vector<8x32xf32>
    %143 = vector.extract_strided_slice %131 {offsets = [0, 160], sizes = [8, 32], strides = [1, 1]} : vector<8x256xf32> to vector<8x32xf32>
    %144 = vector.extract_strided_slice %132 {offsets = [0, 192], sizes = [8, 32], strides = [1, 1]} : vector<8x256xf32> to vector<8x32xf32>
    %145 = vector.extract_strided_slice %131 {offsets = [0, 224], sizes = [8, 32], strides = [1, 1]} : vector<8x256xf32> to vector<8x32xf32>
    %146 = arith.mulf %143, %121 : vector<8x32xf32>
    %147 = arith.mulf %142, %144 : vector<8x32xf32>
    %148 = arith.addf %146, %147 : vector<8x32xf32>
    %149 = math.tanh %148 : vector<8x32xf32>
    %150 = arith.mulf %145, %149 : vector<8x32xf32>
    %151 = tpu.concatenate %19, %141, %150 in 1 : vector<8x8xf32>, vector<8x32xf32>, vector<8x32xf32> -> vector<8x72xf32>
    %cst_33 = arith.constant dense<0.000000e+00> : vector<8x256xf32>
    %152 = tpu.matmul %151, %0, %cst_33 {dimension_numbers = #tpu.dot_dimension_numbers<[1], [0], [0], [1], [0, 0, 1, 1], [], []>} : vector<8x72xf32>, vector<72x256xf32>, vector<8x256xf32> -> vector<8x256xf32>
    %153 = arith.addf %152, %5 : vector<8x256xf32>
    %154 = arith.negf %153 : vector<8x256xf32>
    %155 = math.exp %154 : vector<8x256xf32>
    %cst_34 = arith.constant 1.000000e+00 : f32
    %156 = vector.broadcast %cst_34 : f32 to vector<8x256xf32>
    %157 = arith.addf %156, %155 : vector<8x256xf32>
    %158 = arith.divf %156, %157 : vector<8x256xf32>
    %159 = math.tanh %153 : vector<8x256xf32>
    %160 = vector.extract_strided_slice %158 {offsets = [0, 0], sizes = [8, 32], strides = [1, 1]} : vector<8x256xf32> to vector<8x32xf32>
    %161 = vector.extract_strided_slice %158 {offsets = [0, 32], sizes = [8, 32], strides = [1, 1]} : vector<8x256xf32> to vector<8x32xf32>
    %162 = vector.extract_strided_slice %159 {offsets = [0, 64], sizes = [8, 32], strides = [1, 1]} : vector<8x256xf32> to vector<8x32xf32>
    %163 = vector.extract_strided_slice %158 {offsets = [0, 96], sizes = [8, 32], strides = [1, 1]} : vector<8x256xf32> to vector<8x32xf32>
    %164 = arith.mulf %161, %139 : vector<8x32xf32>
    %165 = arith.mulf %160, %162 : vector<8x32xf32>
    %166 = arith.addf %164, %165 : vector<8x32xf32>
    %167 = math.tanh %166 : vector<8x32xf32>
    %168 = arith.mulf %163, %167 : vector<8x32xf32>
    %169 = vector.extract_strided_slice %158 {offsets = [0, 128], sizes = [8, 32], strides = [1, 1]} : vector<8x256xf32> to vector<8x32xf32>
    %170 = vector.extract_strided_slice %158 {offsets = [0, 160], sizes = [8, 32], strides = [1, 1]} : vector<8x256xf32> to vector<8x32xf32>
    %171 = vector.extract_strided_slice %159 {offsets = [0, 192], sizes = [8, 32], strides = [1, 1]} : vector<8x256xf32> to vector<8x32xf32>
    %172 = vector.extract_strided_slice %158 {offsets = [0, 224], sizes = [8, 32], strides = [1, 1]} : vector<8x256xf32> to vector<8x32xf32>
    %173 = arith.mulf %170, %148 : vector<8x32xf32>
    %174 = arith.mulf %169, %171 : vector<8x32xf32>
    %175 = arith.addf %173, %174 : vector<8x32xf32>
    %176 = math.tanh %175 : vector<8x32xf32>
    %177 = arith.mulf %172, %176 : vector<8x32xf32>
    %178 = tpu.concatenate %21, %168, %177 in 1 : vector<8x8xf32>, vector<8x32xf32>, vector<8x32xf32> -> vector<8x72xf32>
    %cst_35 = arith.constant dense<0.000000e+00> : vector<8x256xf32>
    %179 = tpu.matmul %178, %0, %cst_35 {dimension_numbers = #tpu.dot_dimension_numbers<[1], [0], [0], [1], [0, 0, 1, 1], [], []>} : vector<8x72xf32>, vector<72x256xf32>, vector<8x256xf32> -> vector<8x256xf32>
    %180 = arith.addf %179, %5 : vector<8x256xf32>
    %181 = arith.negf %180 : vector<8x256xf32>
    %182 = math.exp %181 : vector<8x256xf32>
    %cst_36 = arith.constant 1.000000e+00 : f32
    %183 = vector.broadcast %cst_36 : f32 to vector<8x256xf32>
    %184 = arith.addf %183, %182 : vector<8x256xf32>
    %185 = arith.divf %183, %184 : vector<8x256xf32>
    %186 = math.tanh %180 : vector<8x256xf32>
    %187 = vector.extract_strided_slice %185 {offsets = [0, 0], sizes = [8, 32], strides = [1, 1]} : vector<8x256xf32> to vector<8x32xf32>
    %188 = vector.extract_strided_slice %185 {offsets = [0, 32], sizes = [8, 32], strides = [1, 1]} : vector<8x256xf32> to vector<8x32xf32>
    %189 = vector.extract_strided_slice %186 {offsets = [0, 64], sizes = [8, 32], strides = [1, 1]} : vector<8x256xf32> to vector<8x32xf32>
    %190 = vector.extract_strided_slice %185 {offsets = [0, 96], sizes = [8, 32], strides = [1, 1]} : vector<8x256xf32> to vector<8x32xf32>
    %191 = arith.mulf %188, %166 : vector<8x32xf32>
    %192 = arith.mulf %187, %189 : vector<8x32xf32>
    %193 = arith.addf %191, %192 : vector<8x32xf32>
    %194 = math.tanh %193 : vector<8x32xf32>
    %195 = arith.mulf %190, %194 : vector<8x32xf32>
    %196 = vector.extract_strided_slice %185 {offsets = [0, 128], sizes = [8, 32], strides = [1, 1]} : vector<8x256xf32> to vector<8x32xf32>
    %197 = vector.extract_strided_slice %185 {offsets = [0, 160], sizes = [8, 32], strides = [1, 1]} : vector<8x256xf32> to vector<8x32xf32>
    %198 = vector.extract_strided_slice %186 {offsets = [0, 192], sizes = [8, 32], strides = [1, 1]} : vector<8x256xf32> to vector<8x32xf32>
    %199 = vector.extract_strided_slice %185 {offsets = [0, 224], sizes = [8, 32], strides = [1, 1]} : vector<8x256xf32> to vector<8x32xf32>
    %200 = arith.mulf %197, %175 : vector<8x32xf32>
    %201 = arith.mulf %196, %198 : vector<8x32xf32>
    %202 = arith.addf %200, %201 : vector<8x32xf32>
    %203 = math.tanh %202 : vector<8x32xf32>
    %204 = arith.mulf %199, %203 : vector<8x32xf32>
    %205 = tpu.concatenate %23, %195, %204 in 1 : vector<8x8xf32>, vector<8x32xf32>, vector<8x32xf32> -> vector<8x72xf32>
    %cst_37 = arith.constant dense<0.000000e+00> : vector<8x256xf32>
    %206 = tpu.matmul %205, %0, %cst_37 {dimension_numbers = #tpu.dot_dimension_numbers<[1], [0], [0], [1], [0, 0, 1, 1], [], []>} : vector<8x72xf32>, vector<72x256xf32>, vector<8x256xf32> -> vector<8x256xf32>
    %207 = arith.addf %206, %5 : vector<8x256xf32>
    %208 = arith.negf %207 : vector<8x256xf32>
    %209 = math.exp %208 : vector<8x256xf32>
    %cst_38 = arith.constant 1.000000e+00 : f32
    %210 = vector.broadcast %cst_38 : f32 to vector<8x256xf32>
    %211 = arith.addf %210, %209 : vector<8x256xf32>
    %212 = arith.divf %210, %211 : vector<8x256xf32>
    %213 = math.tanh %207 : vector<8x256xf32>
    %214 = vector.extract_strided_slice %212 {offsets = [0, 0], sizes = [8, 32], strides = [1, 1]} : vector<8x256xf32> to vector<8x32xf32>
    %215 = vector.extract_strided_slice %212 {offsets = [0, 32], sizes = [8, 32], strides = [1, 1]} : vector<8x256xf32> to vector<8x32xf32>
    %216 = vector.extract_strided_slice %213 {offsets = [0, 64], sizes = [8, 32], strides = [1, 1]} : vector<8x256xf32> to vector<8x32xf32>
    %217 = vector.extract_strided_slice %212 {offsets = [0, 96], sizes = [8, 32], strides = [1, 1]} : vector<8x256xf32> to vector<8x32xf32>
    %218 = arith.mulf %215, %193 : vector<8x32xf32>
    %219 = arith.mulf %214, %216 : vector<8x32xf32>
    %220 = arith.addf %218, %219 : vector<8x32xf32>
    %221 = math.tanh %220 : vector<8x32xf32>
    %222 = arith.mulf %217, %221 : vector<8x32xf32>
    %223 = vector.extract_strided_slice %212 {offsets = [0, 128], sizes = [8, 32], strides = [1, 1]} : vector<8x256xf32> to vector<8x32xf32>
    %224 = vector.extract_strided_slice %212 {offsets = [0, 160], sizes = [8, 32], strides = [1, 1]} : vector<8x256xf32> to vector<8x32xf32>
    %225 = vector.extract_strided_slice %213 {offsets = [0, 192], sizes = [8, 32], strides = [1, 1]} : vector<8x256xf32> to vector<8x32xf32>
    %226 = vector.extract_strided_slice %212 {offsets = [0, 224], sizes = [8, 32], strides = [1, 1]} : vector<8x256xf32> to vector<8x32xf32>
    %227 = arith.mulf %224, %202 : vector<8x32xf32>
    %228 = arith.mulf %223, %225 : vector<8x32xf32>
    %229 = arith.addf %227, %228 : vector<8x32xf32>
    %230 = math.tanh %229 : vector<8x32xf32>
    %231 = arith.mulf %226, %230 : vector<8x32xf32>
    %232 = tpu.concatenate %222, %231 in 1 : vector<8x32xf32>, vector<8x32xf32> -> vector<8x64xf32>
    %cst_39 = arith.constant dense<0.000000e+00> : vector<8x128xf32>
    %233 = tpu.matmul %232, %1, %cst_39 {dimension_numbers = #tpu.dot_dimension_numbers<[1], [0], [0], [1], [0, 0, 1, 1], [], []>} : vector<8x64xf32>, vector<64x128xf32>, vector<8x128xf32> -> vector<8x128xf32>
    %234 = arith.addf %233, %7 : vector<8x128xf32>
    %235 = arith.negf %234 : vector<8x128xf32>
    %236 = math.exp %235 : vector<8x128xf32>
    %cst_40 = arith.constant 1.000000e+00 : f32
    %237 = vector.broadcast %cst_40 : f32 to vector<8x128xf32>
    %238 = arith.addf %237, %236 : vector<8x128xf32>
    %239 = arith.divf %237, %238 : vector<8x128xf32>
    %240 = math.tanh %234 : vector<8x128xf32>
    %241 = vector.extract_strided_slice %239 {offsets = [0, 0], sizes = [8, 32], strides = [1, 1]} : vector<8x128xf32> to vector<8x32xf32>
    %242 = vector.extract_strided_slice %239 {offsets = [0, 32], sizes = [8, 32], strides = [1, 1]} : vector<8x128xf32> to vector<8x32xf32>
    %243 = vector.extract_strided_slice %240 {offsets = [0, 64], sizes = [8, 32], strides = [1, 1]} : vector<8x128xf32> to vector<8x32xf32>
    %244 = vector.extract_strided_slice %239 {offsets = [0, 96], sizes = [8, 32], strides = [1, 1]} : vector<8x128xf32> to vector<8x32xf32>
    %245 = arith.mulf %242, %229 : vector<8x32xf32>
    %246 = arith.mulf %241, %243 : vector<8x32xf32>
    %247 = arith.addf %245, %246 : vector<8x32xf32>
    %248 = math.tanh %247 : vector<8x32xf32>
    %249 = arith.mulf %244, %248 : vector<8x32xf32>
    %cst_41 = arith.constant dense<0.000000e+00> : vector<8xf32>
    %250 = vector.multi_reduction <add>, %249, %cst_41 [1] : vector<8x32xf32> to vector<8xf32>
    %251 = vector.shape_cast %250 : vector<8xf32> to vector<8x1xf32>
    %cst_42 = arith.constant 3.200000e+01 : f32
    %252 = vector.broadcast %cst_42 : f32 to vector<8x1xf32>
    %253 = arith.divf %251, %252 : vector<8x1xf32>
    %254 = vector.broadcast %253 : vector<8x1xf32> to vector<8x32xf32>
    %255 = arith.subf %249, %254 : vector<8x32xf32>
    %256 = arith.mulf %255, %255 : vector<8x32xf32>
    %cst_43 = arith.constant dense<0.000000e+00> : vector<8xf32>
    %257 = vector.multi_reduction <add>, %256, %cst_43 [1] : vector<8x32xf32> to vector<8xf32>
    %258 = vector.shape_cast %257 : vector<8xf32> to vector<8x1xf32>
    %cst_44 = arith.constant 3.200000e+01 : f32
    %259 = vector.broadcast %cst_44 : f32 to vector<8x1xf32>
    %260 = arith.divf %258, %259 : vector<8x1xf32>
    %261 = vector.broadcast %253 : vector<8x1xf32> to vector<8x32xf32>
    %262 = arith.subf %249, %261 : vector<8x32xf32>
    %cst_45 = arith.constant 9.99999974E-6 : f32
    %263 = vector.broadcast %cst_45 : f32 to vector<8x1xf32>
    %264 = arith.addf %260, %263 : vector<8x1xf32>
    %265 = math.rsqrt %264 : vector<8x1xf32>
    %266 = vector.broadcast %265 : vector<8x1xf32> to vector<8x32xf32>
    %267 = arith.mulf %262, %266 : vector<8x32xf32>
    %c0_46 = arith.constant 0 : index
    %c0_47 = arith.constant 0 : index
    %268 = vector.load %arg4[%c0_46, %c0_47] : memref<1x32xf32, #tpu.memory_space<vmem>>, vector<1x32xf32>
    %269 = vector.broadcast %268 : vector<1x32xf32> to vector<8x32xf32>
    %270 = arith.mulf %267, %269 : vector<8x32xf32>
    %c0_48 = arith.constant 0 : index
    %c0_49 = arith.constant 0 : index
    %271 = vector.load %arg5[%c0_48, %c0_49] : memref<1x32xf32, #tpu.memory_space<vmem>>, vector<1x32xf32>
    %272 = vector.broadcast %271 : vector<1x32xf32> to vector<8x32xf32>
    %273 = arith.addf %270, %272 : vector<8x32xf32>
    %c0_50 = arith.constant 0 : index
    %c0_51 = arith.constant 0 : index
    %274 = vector.load %arg6[%c0_50, %c0_51] : memref<32x8xf32, #tpu.memory_space<vmem>>, vector<32x8xf32>
    %cst_52 = arith.constant dense<0.000000e+00> : vector<8x8xf32>
    %275 = tpu.matmul %273, %274, %cst_52 {dimension_numbers = #tpu.dot_dimension_numbers<[1], [0], [0], [1], [0, 0, 1, 1], [], []>} : vector<8x32xf32>, vector<32x8xf32>, vector<8x8xf32> -> vector<8x8xf32>
    %c0_53 = arith.constant 0 : index
    %c0_54 = arith.constant 0 : index
    %276 = vector.load %arg7[%c0_53, %c0_54] : memref<1x8xf32, #tpu.memory_space<vmem>>, vector<1x8xf32>
    %277 = vector.broadcast %276 : vector<1x8xf32> to vector<8x8xf32>
    %278 = arith.addf %275, %277 : vector<8x8xf32>
    %c0_55 = arith.constant 0 : index
    %c0_56 = arith.constant 0 : index
    %279 = vector.load %arg8[%c0_55, %c0_56] : memref<8x8xf32, #tpu.memory_space<vmem>>, vector<8x8xf32>
    tpu.vector_store %arg8[%c0_55, %c0_56], %278 {strides = array<i32>} : memref<8x8xf32, #tpu.memory_space<vmem>>, vector<8x8xf32>,
    return
  }
}

</mosaic_0001>

<llo_original>
// kernel: tpu_custom_call.1
$region0: #{tpu_custom_call.1}
  #allocation0 [shape = 'u32[]', space=smem, size = 0x4, offset = 0x4, fixed_abs, tag = 'smem constant byte address 0x4 - core index']
  #allocation1 [shape = 'u32[72,128]{1,0:T(1,128)}', space=vmem, size = 0x9000, scoped, tag = 'internal scratch']
  %s0 = inlined_call_operand.hbm [shape: f32[8,8,8], index: 0, kind: input, shape index: {}]
  %s1 = inlined_call_operand.hbm [shape: f32[72,256], index: 1, kind: input, shape index: {}]
  %s2 = inlined_call_operand.vmem [shape: f32[1,256], index: 2, kind: input, shape index: {}]
  %s3 = inlined_call_operand.hbm [shape: f32[64,128], index: 3, kind: input, shape index: {}]
  %s4 = inlined_call_operand.vmem [shape: f32[1,32], index: 4, kind: input, shape index: {}]
  %s5 = inlined_call_operand.vmem [shape: f32[1,32], index: 5, kind: input, shape index: {}]
  %s6 = inlined_call_operand.vmem [shape: f32[32,8], index: 6, kind: input, shape index: {}]
  %s7 = inlined_call_operand.vmem [shape: f32[1,8], index: 7, kind: input, shape index: {}]
  %s8 = inlined_call_operand.hbm [shape: f32[8,8], index: 8, kind: output, shape index: {}]
  %s9 = sld [smem:[#allocation0]]
  $region54: #{tpu_custom_call.1} parent=0
    _
  %s11 = ssub.s32 1, %s9
  %s12 = scalar_select 0, %s11, %s9
  $region1: #{tpu_custom_call.1} parent=0
    #allocation2 [shape = 'u8[32768]{0}', space=vmem, size = 0x8000, scoped, tag = 'input window, operand 0, single buffered']
    #allocation3 [shape = 's32[1]{0}', space=sflag, size = 0x4, scoped, tag = 'scoped memory for tpu_custom_call.1']
    #allocation4 [shape = 's32[1]{0}', space=sflag, size = 0x4, scoped, tag = 'scoped memory for tpu_custom_call.1']
    #allocation5 [shape = 'u8[73728]{0}', space=vmem, size = 0x12000, scoped, tag = 'input window, operand 1, single buffered']
    #allocation6 [shape = 's32[1]{0}', space=sflag, size = 0x4, scoped, tag = 'scoped memory for tpu_custom_call.1']
    #allocation7 [shape = 'u8[32768]{0}', space=vmem, size = 0x8000, scoped, tag = 'input window, operand 3, single buffered']
    #allocation8 [shape = 'u8[4096]{0}', space=vmem, size = 0x1000, scoped, tag = 'output window, operand 0, single buffered']
    %13 = vsyncpa [#allocation3], 0
    %14 = vsyncpa [#allocation6], 0
    %15 = vsyncpa [#allocation4], 0
    // Predicated region
    $region2: #{tpu_custom_call.1} parent=1 // pred_check
      _
    $region3: #{tpu_custom_call.1} parent=1 // pred_check_branch
      %17 = sbr.rel (0) target = $region5
    $region4: #{tpu_custom_call.1} parent=1 // pred_region
      %19 = vsyncadd [#allocation3], 0
      %s20 = sshll.u32 %s0, 4
      %s21 = int_to_ptr.hbm [resolvable:$true] %s20
      %s22 = sshll.u32 [#allocation2], 4
      %s23 = int_to_ptr.vmem [resolvable:$true] %s22
      %28 = dma.hbm_to_vmem [thread:$0]  %s21, 1024, %s23, [#allocation3], 128, 128, 8
    $region5: #{tpu_custom_call.1} parent=1 // pred_fallthru
      _
    // Predicated region
    $region6: #{tpu_custom_call.1} parent=1 // pred_check
      _
    $region7: #{tpu_custom_call.1} parent=1 // pred_check_branch
      %30 = sbr.rel (0) target = $region9
    $region8: #{tpu_custom_call.1} parent=1 // pred_region
      %32 = vsyncadd [#allocation6], 0
      %s33 = sshll.u32 %s1, 4
      %s34 = int_to_ptr.hbm [resolvable:$true] %s33
      %s35 = sshll.u32 [#allocation5], 4
      %s36 = int_to_ptr.vmem [resolvable:$true] %s35
      %41 = dma.hbm_to_vmem [thread:$0]  %s34, 2304, %s36, [#allocation6], 256, 256, 16
    $region9: #{tpu_custom_call.1} parent=1 // pred_fallthru
      _
    // Predicated region
    $region10: #{tpu_custom_call.1} parent=1 // pred_check
      _
    $region11: #{tpu_custom_call.1} parent=1 // pred_check_branch
      %43 = sbr.rel (0) target = $region13
    $region12: #{tpu_custom_call.1} parent=1 // pred_region
      _
    $region13: #{tpu_custom_call.1} parent=1 // pred_fallthru
      _
    // Predicated region
    $region14: #{tpu_custom_call.1} parent=1 // pred_check
      _
    $region15: #{tpu_custom_call.1} parent=1 // pred_check_branch
      %45 = sbr.rel (0) target = $region17
    $region16: #{tpu_custom_call.1} parent=1 // pred_region
      %47 = vsyncadd [#allocation6], 0
      %s48 = sshll.u32 %s3, 4
      %s49 = int_to_ptr.hbm [resolvable:$true] %s48
      %s50 = sshll.u32 [#allocation7], 4
      %s51 = int_to_ptr.vmem [resolvable:$true] %s50
      %56 = dma.hbm_to_vmem [thread:$0]  %s49, 1024, %s51, [#allocation6], 128, 128, 8
    $region17: #{tpu_custom_call.1} parent=1 // pred_fallthru
      _
    // Predicated region
    $region18: #{tpu_custom_call.1} parent=1 // pred_check
      _
    $region19: #{tpu_custom_call.1} parent=1 // pred_check_branch
      %58 = sbr.rel (0) target = $region21
    $region20: #{tpu_custom_call.1} parent=1 // pred_region
      _
    $region21: #{tpu_custom_call.1} parent=1 // pred_fallthru
      _
    // Predicated region
    $region22: #{tpu_custom_call.1} parent=1 // pred_check
      _
    $region23: #{tpu_custom_call.1} parent=1 // pred_check_branch
      %60 = sbr.rel (0) target = $region25
    $region24: #{tpu_custom_call.1} parent=1 // pred_region
      _
    $region25: #{tpu_custom_call.1} parent=1 // pred_fallthru
      _
    // Predicated region
    $region26: #{tpu_custom_call.1} parent=1 // pred_check
      _
    $region27: #{tpu_custom_call.1} parent=1 // pred_check_branch
      %62 = sbr.rel (0) target = $region29
    $region28: #{tpu_custom_call.1} parent=1 // pred_region
      _
    $region29: #{tpu_custom_call.1} parent=1 // pred_fallthru
      _
    // Predicated region
    $region30: #{tpu_custom_call.1} parent=1 // pred_check
      _
    $region31: #{tpu_custom_call.1} parent=1 // pred_check_branch
      %64 = sbr.rel (0) target = $region33
    $region32: #{tpu_custom_call.1} parent=1 // pred_region
      _
    $region33: #{tpu_custom_call.1} parent=1 // pred_fallthru
      _
    // Predicated region
    $region34: #{tpu_custom_call.1} parent=1 // pred_check
      _
    $region35: #{tpu_custom_call.1} parent=1 // pred_check_branch
      %66 = sbr.rel (0) target = $region37
    $region36: #{tpu_custom_call.1} parent=1 // pred_region
      %68 = dma.done [#allocation3], 1024
    $region37: #{tpu_custom_call.1} parent=1 // pred_fallthru
      _
    // Predicated region
    $region38: #{tpu_custom_call.1} parent=1 // pred_check
      _
    $region39: #{tpu_custom_call.1} parent=1 // pred_check_branch
      %70 = sbr.rel (0) target = $region41
    $region40: #{tpu_custom_call.1} parent=1 // pred_region
      %72 = dma.done [#allocation6], 2304
    $region41: #{tpu_custom_call.1} parent=1 // pred_fallthru
      _
    // Predicated region
    $region42: #{tpu_custom_call.1} parent=1 // pred_check
      _
    $region43: #{tpu_custom_call.1} parent=1 // pred_check_branch
      %74 = sbr.rel (0) target = $region45
    $region44: #{tpu_custom_call.1} parent=1 // pred_region
      %76 = dma.done [#allocation6], 1024
    $region45: #{tpu_custom_call.1} parent=1 // pred_fallthru
      _
    %v77 = vld [vmem:[#allocation5] sm:$0xff]
    %v78 = vld [vmem:[#allocation5 + $0x8] sm:$0xff]
    %v79 = vld [vmem:[#allocation5 + $0x10] sm:$0xff]
    %v80 = vld [vmem:[#allocation5 + $0x18] sm:$0xff]
    %v81 = vld [vmem:[#allocation5 + $0x20] sm:$0xff]
    %v82 = vld [vmem:[#allocation5 + $0x28] sm:$0xff]
    %v83 = vld [vmem:[#allocation5 + $0x30] sm:$0xff]
    %v84 = vld [vmem:[#allocation5 + $0x38] sm:$0xff]
    %v85 = vld [vmem:[#allocation5 + $0x40] sm:$0xff]
    %v86 = vld [vmem:[#allocation5 + $0x48] sm:$0xff]
    %v87 = vld [vmem:[#allocation5 + $0x50] sm:$0xff]
    %v88 = vld [vmem:[#allocation5 + $0x58] sm:$0xff]
    %v89 = vld [vmem:[#allocation5 + $0x60] sm:$0xff]
    %v90 = vld [vmem:[#allocation5 + $0x68] sm:$0xff]
    %v91 = vld [vmem:[#allocation5 + $0x70] sm:$0xff]
    %v92 = vld [vmem:[#allocation5 + $0x78] sm:$0xff]
    %v93 = vld [vmem:[#allocation5 + $0x80] sm:$0xff]
    %v94 = vld [vmem:[#allocation5 + $0x88] sm:$0xff]
    %v95 = vld [vmem:[#allocation7] sm:$0xff]
    %v96 = vld [vmem:[#allocation7 + $0x8] sm:$0xff]
    %v97 = vld [vmem:[#allocation7 + $0x10] sm:$0xff]
    %v98 = vld [vmem:[#allocation7 + $0x18] sm:$0xff]
    %v99 = vld [vmem:[#allocation7 + $0x20] sm:$0xff]
    %v100 = vld [vmem:[#allocation7 + $0x28] sm:$0xff]
    %v101 = vld [vmem:[#allocation7 + $0x30] sm:$0xff]
    %v102 = vld [vmem:[#allocation7 + $0x38] sm:$0xff]
    %v103 = vld [vmem:[%s2] sm:$0x3]
    %v105 = vperm.slane %v103, 0
    %v106 = vperm.slane %v103, 1
    %v109 = vadd.f32 %v105, 0.0
    %v110 = vadd.f32 %v106, 0.0
    %v111 = vld [vmem:[#allocation2] sm:$0xff]
    %s112 = scalar_lea.vmem [#allocation2], 8
    %v113 = vld [vmem:[%s112] sm:$0xff]
    %s114 = scalar_lea.vmem [#allocation2], 16
    %v115 = vld [vmem:[%s114] sm:$0xff]
    %s116 = scalar_lea.vmem [#allocation2], 24
    %v117 = vld [vmem:[%s116] sm:$0xff]
    %s118 = scalar_lea.vmem [#allocation2], 32
    %v119 = vld [vmem:[%s118] sm:$0xff]
    %s120 = scalar_lea.vmem [#allocation2], 40
    %v121 = vld [vmem:[%s120] sm:$0xff]
    %s122 = scalar_lea.vmem [#allocation2], 48
    %v123 = vld [vmem:[%s122] sm:$0xff]
    %s124 = scalar_lea.vmem [#allocation2], 56
    %v125 = vld [vmem:[%s124] sm:$0xff]
    %vm126 = vcmask 64512
    %v128 = vsel %vm126, %v111, 0
    %130 = vmatpush.msra.mxu0 0.0
    %131 = vmatpush.msra.mxu0 0.0
    %132 = vmatpush.msra.mxu0 0.0
    %133 = vmatpush.msra.mxu0 0.0
    %134 = vmatpush.msra.mxu0 0.0
    %135 = vmatpush.msra.mxu0 0.0
    %136 = vmatpush.msra.mxu0 0.0
    %137 = vmatpush.msra.mxu0 0.0
    %138 = vmatpush.msra.mxu0 0.0
    %139 = vmatpush.msra.mxu0 0.0
    %140 = vmatpush.msra.mxu0 0.0
    %141 = vmatpush.msra.mxu0 0.0
    %142 = vmatpush.msra.mxu0 0.0
    %143 = vmatpush.msra.mxu0 0.0
    %144 = vmatpush.msra.mxu0 0.0
    %145 = vmatpush.msra.mxu0 %v77
    %146 = vmatmul.f32.gmra.mxu0 %v128
    %v147 = vpop.f32.mrf.mxu0
    %v148 = vadd.f32 %v109, %v147
    %149 = vdwg.mxu0
    %v150 = vxor.u32 %v148, 2147483648
    %v151 = vmul.f32 %v150, 1.442695
    %v152 = vpow.pop %v151
    %v153 = vadd.f32 %v152, 1.0
    %v154 = vrcp.pop %v153
    %v155 = vmul.f32 %v153, %v154
    %v156 = vsub.f32 1.0, %v155
    %v157 = vmul.f32 %v154, %v156
    %v158 = vadd.f32 %v154, %v157
    %vm159 = vweird.f32 %v153
    %vm160 = vweird.f32 %v154
    %vm161 = vmor %vm159, %vm160
    %v162 = vsel %vm161, %v154, %v158
    %v163 = vand.u32 2147483647, %v153
    %vm164 = vcmp.eq.f32.partialorder %v163, 8.507059e+37
    %v165 = vand.u32 %v153, 2147483648
    %v166 = vor.u32 1.1754944e-38, %v165
    %v167 = vsel %vm164, %v166, %v162
    %v168 = vmul.f32 1.0, %v167
    %v169 = vtanh.pop %v148
    %v170 = vmul.f32 %v168, 0.0
    %172 = vrot.lane.b32.xlu0 %v169, 64
    %v173 = vpop.permute.xlu0 %172
    %v175 = vmul.f32 %v168, %v173
    %177 = vrot.lane.b32.xlu0 %v175, 32
    %v178 = vpop.permute.xlu0 %177
    %v180 = vadd.f32 %v170, %v178
    %v181 = vtanh.pop %v180
    %183 = vrot.lane.b32.xlu0 %v181, 64
    %v184 = vpop.permute.xlu0 %183
    %v186 = vmul.f32 %v168, %v184
    %188 = vrot.lane.b32.xlu0 %v186, 40
    %v189 = vpop.permute.xlu0 %188
    %v191 = vsel %vm126, %v113, %v189
    %vm192 = vcmask 326656
    %v193 = vsel %vm192, %v191, 0.0
    %vm194 = vcmask 588800
    %v196 = vsel %vm194, %v193, 0
    %198 = vmatpush.msra.mxu0 0.0
    %199 = vmatpush.msra.mxu0 0.0
    %200 = vmatpush.msra.mxu0 0.0
    %201 = vmatpush.msra.mxu0 0.0
    %202 = vmatpush.msra.mxu0 0.0
    %203 = vmatpush.msra.mxu0 0.0
    %204 = vmatpush.msra.mxu0 0.0
    %205 = vmatpush.msra.mxu0 %v93
    %206 = vmatpush.msra.mxu0 %v91
    %207 = vmatpush.msra.mxu0 %v89
    %208 = vmatpush.msra.mxu0 %v87
    %209 = vmatpush.msra.mxu0 %v85
    %210 = vmatpush.msra.mxu0 %v83
    %211 = vmatpush.msra.mxu0 %v81
    %212 = vmatpush.msra.mxu0 %v79
    %213 = vmatpush.msra.mxu0 %v77
    %214 = vmatmul.f32.gmra.mxu0 %v196
    %v215 = vpop.f32.mrf.mxu0
    %v216 = vadd.f32 %v109, %v215
    %217 = vdwg.mxu0
    %218 = vmatpush.msra.mxu0 0.0
    %219 = vmatpush.msra.mxu0 0.0
    %220 = vmatpush.msra.mxu0 0.0
    %221 = vmatpush.msra.mxu0 0.0
    %222 = vmatpush.msra.mxu0 0.0
    %223 = vmatpush.msra.mxu0 0.0
    %224 = vmatpush.msra.mxu0 0.0
    %225 = vmatpush.msra.mxu0 %v94
    %226 = vmatpush.msra.mxu0 %v92
    %227 = vmatpush.msra.mxu0 %v90
    %228 = vmatpush.msra.mxu0 %v88
    %229 = vmatpush.msra.mxu0 %v86
    %230 = vmatpush.msra.mxu0 %v84
    %231 = vmatpush.msra.mxu0 %v82
    %232 = vmatpush.msra.mxu0 %v80
    %233 = vmatpush.msra.mxu0 %v78
    %234 = vmatmul.f32.gmra.mxu0 %v196
    %v235 = vpop.f32.mrf.mxu0
    %v236 = vadd.f32 %v110, %v235
    %237 = vdwg.mxu0
    %v238 = vxor.u32 %v216, 2147483648
    %v239 = vxor.u32 %v236, 2147483648
    %v240 = vmul.f32 %v238, 1.442695
    %v241 = vpow.pop %v240
    %v242 = vmul.f32 %v239, 1.442695
    %v243 = vpow.pop %v242
    %v244 = vadd.f32 %v241, 1.0
    %v245 = vadd.f32 %v243, 1.0
    %v246 = vrcp.pop %v244
    %v247 = vmul.f32 %v244, %v246
    %v248 = vsub.f32 1.0, %v247
    %v249 = vmul.f32 %v246, %v248
    %v250 = vadd.f32 %v246, %v249
    %vm251 = vweird.f32 %v244
    %vm252 = vweird.f32 %v246
    %vm253 = vmor %vm251, %vm252
    %v254 = vsel %vm253, %v246, %v250
    %v255 = vand.u32 2147483647, %v244
    %vm256 = vcmp.eq.f32.partialorder %v255, 8.507059e+37
    %v257 = vand.u32 %v244, 2147483648
    %v258 = vor.u32 1.1754944e-38, %v257
    %v259 = vsel %vm256, %v258, %v254
    %v260 = vmul.f32 1.0, %v259
    %v261 = vrcp.pop %v245
    %v262 = vmul.f32 %v245, %v261
    %v263 = vsub.f32 1.0, %v262
    %v264 = vmul.f32 %v261, %v263
    %v265 = vadd.f32 %v261, %v264
    %vm266 = vweird.f32 %v245
    %vm267 = vweird.f32 %v261
    %vm268 = vmor %vm266, %vm267
    %v269 = vsel %vm268, %v261, %v265
    %v270 = vand.u32 2147483647, %v245
    %vm271 = vcmp.eq.f32.partialorder %v270, 8.507059e+37
    %v272 = vand.u32 %v245, 2147483648
    %v273 = vor.u32 1.1754944e-38, %v272
    %v274 = vsel %vm271, %v273, %v269
    %v275 = vmul.f32 1.0, %v274
    %v276 = vtanh.pop %v216
    %v277 = vtanh.pop %v236
    %v278 = vmul.f32 %v260, %v180
    %280 = vrot.lane.b32.xlu0 %v276, 64
    %v281 = vpop.permute.xlu0 %280
    %v283 = vmul.f32 %v260, %v281
    %285 = vrot.lane.b32.xlu0 %v283, 32
    %v286 = vpop.permute.xlu0 %285
    %v288 = vadd.f32 %v278, %v286
    %v289 = vtanh.pop %v288
    %291 = vrot.lane.b32.xlu0 %v289, 64
    %v292 = vpop.permute.xlu0 %291
    %v294 = vmul.f32 %v260, %v292
    %v295 = vmul.f32 %v275, 0.0
    %297 = vrot.lane.b32.xlu0 %v277, 64
    %v298 = vpop.permute.xlu0 %297
    %v300 = vmul.f32 %v275, %v298
    %302 = vrot.lane.b32.xlu0 %v300, 32
    %v303 = vpop.permute.xlu0 %302
    %v305 = vadd.f32 %v295, %v303
    %v306 = vtanh.pop %v305
    %308 = vrot.lane.b32.xlu0 %v306, 64
    %v309 = vpop.permute.xlu0 %308
    %v311 = vmul.f32 %v275, %v309
    %313 = vrot.lane.b32.xlu0 %v294, 40
    %v314 = vpop.permute.xlu0 %313
    %317 = vrot.lane.b32.xlu0 %v311, 72
    %v318 = vpop.permute.xlu0 %317
    %v320 = vsel %vm126, %v115, %v314
    %v321 = vsel %vm192, %v320, %v318
    %v323 = vsel %vm194, %v321, 0
    %325 = vmatpush.msra.mxu0 0.0
    %326 = vmatpush.msra.mxu0 0.0
    %327 = vmatpush.msra.mxu0 0.0
    %328 = vmatpush.msra.mxu0 0.0
    %329 = vmatpush.msra.mxu0 0.0
    %330 = vmatpush.msra.mxu0 0.0
    %331 = vmatpush.msra.mxu0 0.0
    %332 = vmatpush.msra.mxu0 %v93
    %333 = vmatpush.msra.mxu0 %v91
    %334 = vmatpush.msra.mxu0 %v89
    %335 = vmatpush.msra.mxu0 %v87
    %336 = vmatpush.msra.mxu0 %v85
    %337 = vmatpush.msra.mxu0 %v83
    %338 = vmatpush.msra.mxu0 %v81
    %339 = vmatpush.msra.mxu0 %v79
    %340 = vmatpush.msra.mxu0 %v77
    %341 = vmatmul.f32.gmra.mxu0 %v323
    %v342 = vpop.f32.mrf.mxu0
    %v343 = vadd.f32 %v109, %v342
    %344 = vdwg.mxu0
    %345 = vmatpush.msra.mxu0 0.0
    %346 = vmatpush.msra.mxu0 0.0
    %347 = vmatpush.msra.mxu0 0.0
    %348 = vmatpush.msra.mxu0 0.0
    %349 = vmatpush.msra.mxu0 0.0
    %350 = vmatpush.msra.mxu0 0.0
    %351 = vmatpush.msra.mxu0 0.0
    %352 = vmatpush.msra.mxu0 %v94
    %353 = vmatpush.msra.mxu0 %v92
    %354 = vmatpush.msra.mxu0 %v90
    %355 = vmatpush.msra.mxu0 %v88
    %356 = vmatpush.msra.mxu0 %v86
    %357 = vmatpush.msra.mxu0 %v84
    %358 = vmatpush.msra.mxu0 %v82
    %359 = vmatpush.msra.mxu0 %v80
    %360 = vmatpush.msra.mxu0 %v78
    %361 = vmatmul.f32.gmra.mxu0 %v323
    %v362 = vpop.f32.mrf.mxu0
    %v363 = vadd.f32 %v110, %v362
    %364 = vdwg.mxu0
    %v365 = vxor.u32 %v343, 2147483648
    %v366 = vxor.u32 %v363, 2147483648
    %v367 = vmul.f32 %v365, 1.442695
    %v368 = vpow.pop %v367
    %v369 = vmul.f32 %v366, 1.442695
    %v370 = vpow.pop %v369
    %v371 = vadd.f32 %v368, 1.0
    %v372 = vadd.f32 %v370, 1.0
    %v373 = vrcp.pop %v371
    %v374 = vmul.f32 %v371, %v373
    %v375 = vsub.f32 1.0, %v374
    %v376 = vmul.f32 %v373, %v375
    %v377 = vadd.f32 %v373, %v376
    %vm378 = vweird.f32 %v371
    %vm379 = vweird.f32 %v373
    %vm380 = vmor %vm378, %vm379
    %v381 = vsel %vm380, %v373, %v377
    %v382 = vand.u32 2147483647, %v371
    %vm383 = vcmp.eq.f32.partialorder %v382, 8.507059e+37
    %v384 = vand.u32 %v371, 2147483648
    %v385 = vor.u32 1.1754944e-38, %v384
    %v386 = vsel %vm383, %v385, %v381
    %v387 = vmul.f32 1.0, %v386
    %v388 = vrcp.pop %v372
    %v389 = vmul.f32 %v372, %v388
    %v390 = vsub.f32 1.0, %v389
    %v391 = vmul.f32 %v388, %v390
    %v392 = vadd.f32 %v388, %v391
    %vm393 = vweird.f32 %v372
    %vm394 = vweird.f32 %v388
    %vm395 = vmor %vm393, %vm394
    %v396 = vsel %vm395, %v388, %v392
    %v397 = vand.u32 2147483647, %v372
    %vm398 = vcmp.eq.f32.partialorder %v397, 8.507059e+37
    %v399 = vand.u32 %v372, 2147483648
    %v400 = vor.u32 1.1754944e-38, %v399
    %v401 = vsel %vm398, %v400, %v396
    %v402 = vmul.f32 1.0, %v401
    %v403 = vtanh.pop %v343
    %v404 = vtanh.pop %v363
    %v405 = vmul.f32 %v387, %v288
    %407 = vrot.lane.b32.xlu0 %v403, 64
    %v408 = vpop.permute.xlu0 %407
    %v410 = vmul.f32 %v387, %v408
    %412 = vrot.lane.b32.xlu0 %v410, 32
    %v413 = vpop.permute.xlu0 %412
    %v415 = vadd.f32 %v405, %v413
    %v416 = vtanh.pop %v415
    %418 = vrot.lane.b32.xlu0 %v416, 64
    %v419 = vpop.permute.xlu0 %418
    %v421 = vmul.f32 %v387, %v419
    %v422 = vmul.f32 %v402, %v305
    %424 = vrot.lane.b32.xlu0 %v404, 64
    %v425 = vpop.permute.xlu0 %424
    %v427 = vmul.f32 %v402, %v425
    %429 = vrot.lane.b32.xlu0 %v427, 32
    %v430 = vpop.permute.xlu0 %429
    %v432 = vadd.f32 %v422, %v430
    %v433 = vtanh.pop %v432
    %435 = vrot.lane.b32.xlu0 %v433, 64
    %v436 = vpop.permute.xlu0 %435
    %v438 = vmul.f32 %v402, %v436
    %440 = vrot.lane.b32.xlu0 %v421, 40
    %v441 = vpop.permute.xlu0 %440
    %444 = vrot.lane.b32.xlu0 %v438, 72
    %v445 = vpop.permute.xlu0 %444
    %v447 = vsel %vm126, %v117, %v441
    %v448 = vsel %vm192, %v447, %v445
    %v450 = vsel %vm194, %v448, 0
    %452 = vmatpush.msra.mxu0 0.0
    %453 = vmatpush.msra.mxu0 0.0
    %454 = vmatpush.msra.mxu0 0.0
    %455 = vmatpush.msra.mxu0 0.0
    %456 = vmatpush.msra.mxu0 0.0
    %457 = vmatpush.msra.mxu0 0.0
    %458 = vmatpush.msra.mxu0 0.0
    %459 = vmatpush.msra.mxu0 %v93
    %460 = vmatpush.msra.mxu0 %v91
    %461 = vmatpush.msra.mxu0 %v89
    %462 = vmatpush.msra.mxu0 %v87
    %463 = vmatpush.msra.mxu0 %v85
    %464 = vmatpush.msra.mxu0 %v83
    %465 = vmatpush.msra.mxu0 %v81
    %466 = vmatpush.msra.mxu0 %v79
    %467 = vmatpush.msra.mxu0 %v77
    %468 = vmatmul.f32.gmra.mxu0 %v450
    %v469 = vpop.f32.mrf.mxu0
    %v470 = vadd.f32 %v109, %v469
    %471 = vdwg.mxu0
    %472 = vmatpush.msra.mxu0 0.0
    %473 = vmatpush.msra.mxu0 0.0
    %474 = vmatpush.msra.mxu0 0.0
    %475 = vmatpush.msra.mxu0 0.0
    %476 = vmatpush.msra.mxu0 0.0
    %477 = vmatpush.msra.mxu0 0.0
    %478 = vmatpush.msra.mxu0 0.0
    %479 = vmatpush.msra.mxu0 %v94
    %480 = vmatpush.msra.mxu0 %v92
    %481 = vmatpush.msra.mxu0 %v90
    %482 = vmatpush.msra.mxu0 %v88
    %483 = vmatpush.msra.mxu0 %v86
    %484 = vmatpush.msra.mxu0 %v84
    %485 = vmatpush.msra.mxu0 %v82
    %486 = vmatpush.msra.mxu0 %v80
    %487 = vmatpush.msra.mxu0 %v78
    %488 = vmatmul.f32.gmra.mxu0 %v450
    %v489 = vpop.f32.mrf.mxu0
    %v490 = vadd.f32 %v110, %v489
    %491 = vdwg.mxu0
    %v492 = vxor.u32 %v470, 2147483648
    %v493 = vxor.u32 %v490, 2147483648
    %v494 = vmul.f32 %v492, 1.442695
    %v495 = vpow.pop %v494
    %v496 = vmul.f32 %v493, 1.442695
    %v497 = vpow.pop %v496
    %v498 = vadd.f32 %v495, 1.0
    %v499 = vadd.f32 %v497, 1.0
    %v500 = vrcp.pop %v498
    %v501 = vmul.f32 %v498, %v500
    %v502 = vsub.f32 1.0, %v501
    %v503 = vmul.f32 %v500, %v502
    %v504 = vadd.f32 %v500, %v503
    %vm505 = vweird.f32 %v498
    %vm506 = vweird.f32 %v500
    %vm507 = vmor %vm505, %vm506
    %v508 = vsel %vm507, %v500, %v504
    %v509 = vand.u32 2147483647, %v498
    %vm510 = vcmp.eq.f32.partialorder %v509, 8.507059e+37
    %v511 = vand.u32 %v498, 2147483648
    %v512 = vor.u32 1.1754944e-38, %v511
    %v513 = vsel %vm510, %v512, %v508
    %v514 = vmul.f32 1.0, %v513
    %v515 = vrcp.pop %v499
    %v516 = vmul.f32 %v499, %v515
    %v517 = vsub.f32 1.0, %v516
    %v518 = vmul.f32 %v515, %v517
    %v519 = vadd.f32 %v515, %v518
    %vm520 = vweird.f32 %v499
    %vm521 = vweird.f32 %v515
    %vm522 = vmor %vm520, %vm521
    %v523 = vsel %vm522, %v515, %v519
    %v524 = vand.u32 2147483647, %v499
    %vm525 = vcmp.eq.f32.partialorder %v524, 8.507059e+37
    %v526 = vand.u32 %v499, 2147483648
    %v527 = vor.u32 1.1754944e-38, %v526
    %v528 = vsel %vm525, %v527, %v523
    %v529 = vmul.f32 1.0, %v528
    %v530 = vtanh.pop %v470
    %v531 = vtanh.pop %v490
    %v532 = vmul.f32 %v514, %v415
    %534 = vrot.lane.b32.xlu0 %v530, 64
    %v535 = vpop.permute.xlu0 %534
    %v537 = vmul.f32 %v514, %v535
    %539 = vrot.lane.b32.xlu0 %v537, 32
    %v540 = vpop.permute.xlu0 %539
    %v542 = vadd.f32 %v532, %v540
    %v543 = vtanh.pop %v542
    %545 = vrot.lane.b32.xlu0 %v543, 64
    %v546 = vpop.permute.xlu0 %545
    %v548 = vmul.f32 %v514, %v546
    %v549 = vmul.f32 %v529, %v432
    %551 = vrot.lane.b32.xlu0 %v531, 64
    %v552 = vpop.permute.xlu0 %551
    %v554 = vmul.f32 %v529, %v552
    %556 = vrot.lane.b32.xlu0 %v554, 32
    %v557 = vpop.permute.xlu0 %556
    %v559 = vadd.f32 %v549, %v557
    %v560 = vtanh.pop %v559
    %562 = vrot.lane.b32.xlu0 %v560, 64
    %v563 = vpop.permute.xlu0 %562
    %v565 = vmul.f32 %v529, %v563
    %567 = vrot.lane.b32.xlu0 %v548, 40
    %v568 = vpop.permute.xlu0 %567
    %571 = vrot.lane.b32.xlu0 %v565, 72
    %v572 = vpop.permute.xlu0 %571
    %v574 = vsel %vm126, %v119, %v568
    %v575 = vsel %vm192, %v574, %v572
    %v577 = vsel %vm194, %v575, 0
    %579 = vmatpush.msra.mxu0 0.0
    %580 = vmatpush.msra.mxu0 0.0
    %581 = vmatpush.msra.mxu0 0.0
    %582 = vmatpush.msra.mxu0 0.0
    %583 = vmatpush.msra.mxu0 0.0
    %584 = vmatpush.msra.mxu0 0.0
    %585 = vmatpush.msra.mxu0 0.0
    %586 = vmatpush.msra.mxu0 %v93
    %587 = vmatpush.msra.mxu0 %v91
    %588 = vmatpush.msra.mxu0 %v89
    %589 = vmatpush.msra.mxu0 %v87
    %590 = vmatpush.msra.mxu0 %v85
    %591 = vmatpush.msra.mxu0 %v83
    %592 = vmatpush.msra.mxu0 %v81
    %593 = vmatpush.msra.mxu0 %v79
    %594 = vmatpush.msra.mxu0 %v77
    %595 = vmatmul.f32.gmra.mxu0 %v577
    %v596 = vpop.f32.mrf.mxu0
    %v597 = vadd.f32 %v109, %v596
    %598 = vdwg.mxu0
    %599 = vmatpush.msra.mxu0 0.0
    %600 = vmatpush.msra.mxu0 0.0
    %601 = vmatpush.msra.mxu0 0.0
    %602 = vmatpush.msra.mxu0 0.0
    %603 = vmatpush.msra.mxu0 0.0
    %604 = vmatpush.msra.mxu0 0.0
    %605 = vmatpush.msra.mxu0 0.0
    %606 = vmatpush.msra.mxu0 %v94
    %607 = vmatpush.msra.mxu0 %v92
    %608 = vmatpush.msra.mxu0 %v90
    %609 = vmatpush.msra.mxu0 %v88
    %610 = vmatpush.msra.mxu0 %v86
    %611 = vmatpush.msra.mxu0 %v84
    %612 = vmatpush.msra.mxu0 %v82
    %613 = vmatpush.msra.mxu0 %v80
    %614 = vmatpush.msra.mxu0 %v78
    %615 = vmatmul.f32.gmra.mxu0 %v577
    %v616 = vpop.f32.mrf.mxu0
    %v617 = vadd.f32 %v110, %v616
    %618 = vdwg.mxu0
    %v619 = vxor.u32 %v597, 2147483648
    %v620 = vxor.u32 %v617, 2147483648
    %v621 = vmul.f32 %v619, 1.442695
    %v622 = vpow.pop %v621
    %v623 = vmul.f32 %v620, 1.442695
    %v624 = vpow.pop %v623
    %v625 = vadd.f32 %v622, 1.0
    %v626 = vadd.f32 %v624, 1.0
    %v627 = vrcp.pop %v625
    %v628 = vmul.f32 %v625, %v627
    %v629 = vsub.f32 1.0, %v628
    %v630 = vmul.f32 %v627, %v629
    %v631 = vadd.f32 %v627, %v630
    %vm632 = vweird.f32 %v625
    %vm633 = vweird.f32 %v627
    %vm634 = vmor %vm632, %vm633
    %v635 = vsel %vm634, %v627, %v631
    %v636 = vand.u32 2147483647, %v625
    %vm637 = vcmp.eq.f32.partialorder %v636, 8.507059e+37
    %v638 = vand.u32 %v625, 2147483648
    %v639 = vor.u32 1.1754944e-38, %v638
    %v640 = vsel %vm637, %v639, %v635
    %v641 = vmul.f32 1.0, %v640
    %v642 = vrcp.pop %v626
    %v643 = vmul.f32 %v626, %v642
    %v644 = vsub.f32 1.0, %v643
    %v645 = vmul.f32 %v642, %v644
    %v646 = vadd.f32 %v642, %v645
    %vm647 = vweird.f32 %v626
    %vm648 = vweird.f32 %v642
    %vm649 = vmor %vm647, %vm648
    %v650 = vsel %vm649, %v642, %v646
    %v651 = vand.u32 2147483647, %v626
    %vm652 = vcmp.eq.f32.partialorder %v651, 8.507059e+37
    %v653 = vand.u32 %v626, 2147483648
    %v654 = vor.u32 1.1754944e-38, %v653
    %v655 = vsel %vm652, %v654, %v650
    %v656 = vmul.f32 1.0, %v655
    %v657 = vtanh.pop %v597
    %v658 = vtanh.pop %v617
    %v659 = vmul.f32 %v641, %v542
    %661 = vrot.lane.b32.xlu0 %v657, 64
    %v662 = vpop.permute.xlu0 %661
    %v664 = vmul.f32 %v641, %v662
    %666 = vrot.lane.b32.xlu0 %v664, 32
    %v667 = vpop.permute.xlu0 %666
    %v669 = vadd.f32 %v659, %v667
    %v670 = vtanh.pop %v669
    %672 = vrot.lane.b32.xlu0 %v670, 64
    %v673 = vpop.permute.xlu0 %672
    %v675 = vmul.f32 %v641, %v673
    %v676 = vmul.f32 %v656, %v559
    %678 = vrot.lane.b32.xlu0 %v658, 64
    %v679 = vpop.permute.xlu0 %678
    %v681 = vmul.f32 %v656, %v679
    %683 = vrot.lane.b32.xlu0 %v681, 32
    %v684 = vpop.permute.xlu0 %683
    %v686 = vadd.f32 %v676, %v684
    %v687 = vtanh.pop %v686
    %689 = vrot.lane.b32.xlu0 %v687, 64
    %v690 = vpop.permute.xlu0 %689
    %v692 = vmul.f32 %v656, %v690
    %694 = vrot.lane.b32.xlu0 %v675, 40
    %v695 = vpop.permute.xlu0 %694
    %698 = vrot.lane.b32.xlu0 %v692, 72
    %v699 = vpop.permute.xlu0 %698
    %v701 = vsel %vm126, %v121, %v695
    %v702 = vsel %vm192, %v701, %v699
    %v704 = vsel %vm194, %v702, 0
    %706 = vmatpush.msra.mxu0 0.0
    %707 = vmatpush.msra.mxu0 0.0
    %708 = vmatpush.msra.mxu0 0.0
    %709 = vmatpush.msra.mxu0 0.0
    %710 = vmatpush.msra.mxu0 0.0
    %711 = vmatpush.msra.mxu0 0.0
    %712 = vmatpush.msra.mxu0 0.0
    %713 = vmatpush.msra.mxu0 %v93
    %714 = vmatpush.msra.mxu0 %v91
    %715 = vmatpush.msra.mxu0 %v89
    %716 = vmatpush.msra.mxu0 %v87
    %717 = vmatpush.msra.mxu0 %v85
    %718 = vmatpush.msra.mxu0 %v83
    %719 = vmatpush.msra.mxu0 %v81
    %720 = vmatpush.msra.mxu0 %v79
    %721 = vmatpush.msra.mxu0 %v77
    %722 = vmatmul.f32.gmra.mxu0 %v704
    %v723 = vpop.f32.mrf.mxu0
    %v724 = vadd.f32 %v109, %v723
    %725 = vdwg.mxu0
    %726 = vmatpush.msra.mxu0 0.0
    %727 = vmatpush.msra.mxu0 0.0
    %728 = vmatpush.msra.mxu0 0.0
    %729 = vmatpush.msra.mxu0 0.0
    %730 = vmatpush.msra.mxu0 0.0
    %731 = vmatpush.msra.mxu0 0.0
    %732 = vmatpush.msra.mxu0 0.0
    %733 = vmatpush.msra.mxu0 %v94
    %734 = vmatpush.msra.mxu0 %v92
    %735 = vmatpush.msra.mxu0 %v90
    %736 = vmatpush.msra.mxu0 %v88
    %737 = vmatpush.msra.mxu0 %v86
    %738 = vmatpush.msra.mxu0 %v84
    %739 = vmatpush.msra.mxu0 %v82
    %740 = vmatpush.msra.mxu0 %v80
    %741 = vmatpush.msra.mxu0 %v78
    %742 = vmatmul.f32.gmra.mxu0 %v704
    %v743 = vpop.f32.mrf.mxu0
    %v744 = vadd.f32 %v110, %v743
    %745 = vdwg.mxu0
    %v746 = vxor.u32 %v724, 2147483648
    %v747 = vxor.u32 %v744, 2147483648
    %v748 = vmul.f32 %v746, 1.442695
    %v749 = vpow.pop %v748
    %v750 = vmul.f32 %v747, 1.442695
    %v751 = vpow.pop %v750
    %v752 = vadd.f32 %v749, 1.0
    %v753 = vadd.f32 %v751, 1.0
    %v754 = vrcp.pop %v752
    %v755 = vmul.f32 %v752, %v754
    %v756 = vsub.f32 1.0, %v755
    %v757 = vmul.f32 %v754, %v756
    %v758 = vadd.f32 %v754, %v757
    %vm759 = vweird.f32 %v752
    %vm760 = vweird.f32 %v754
    %vm761 = vmor %vm759, %vm760
    %v762 = vsel %vm761, %v754, %v758
    %v763 = vand.u32 2147483647, %v752
    %vm764 = vcmp.eq.f32.partialorder %v763, 8.507059e+37
    %v765 = vand.u32 %v752, 2147483648
    %v766 = vor.u32 1.1754944e-38, %v765
    %v767 = vsel %vm764, %v766, %v762
    %v768 = vmul.f32 1.0, %v767
    %v769 = vrcp.pop %v753
    %v770 = vmul.f32 %v753, %v769
    %v771 = vsub.f32 1.0, %v770
    %v772 = vmul.f32 %v769, %v771
    %v773 = vadd.f32 %v769, %v772
    %vm774 = vweird.f32 %v753
    %vm775 = vweird.f32 %v769
    %vm776 = vmor %vm774, %vm775
    %v777 = vsel %vm776, %v769, %v773
    %v778 = vand.u32 2147483647, %v753
    %vm779 = vcmp.eq.f32.partialorder %v778, 8.507059e+37
    %v780 = vand.u32 %v753, 2147483648
    %v781 = vor.u32 1.1754944e-38, %v780
    %v782 = vsel %vm779, %v781, %v777
    %v783 = vmul.f32 1.0, %v782
    %v784 = vtanh.pop %v724
    %v785 = vtanh.pop %v744
    %v786 = vmul.f32 %v768, %v669
    %788 = vrot.lane.b32.xlu0 %v784, 64
    %v789 = vpop.permute.xlu0 %788
    %v791 = vmul.f32 %v768, %v789
    %793 = vrot.lane.b32.xlu0 %v791, 32
    %v794 = vpop.permute.xlu0 %793
    %v796 = vadd.f32 %v786, %v794
    %v797 = vtanh.pop %v796
    %799 = vrot.lane.b32.xlu0 %v797, 64
    %v800 = vpop.permute.xlu0 %799
    %v802 = vmul.f32 %v768, %v800
    %v803 = vmul.f32 %v783, %v686
    %805 = vrot.lane.b32.xlu0 %v785, 64
    %v806 = vpop.permute.xlu0 %805
    %v808 = vmul.f32 %v783, %v806
    %810 = vrot.lane.b32.xlu0 %v808, 32
    %v811 = vpop.permute.xlu0 %810
    %v813 = vadd.f32 %v803, %v811
    %v814 = vtanh.pop %v813
    %816 = vrot.lane.b32.xlu0 %v814, 64
    %v817 = vpop.permute.xlu0 %816
    %v819 = vmul.f32 %v783, %v817
    %821 = vrot.lane.b32.xlu0 %v802, 40
    %v822 = vpop.permute.xlu0 %821
    %825 = vrot.lane.b32.xlu0 %v819, 72
    %v826 = vpop.permute.xlu0 %825
    %v828 = vsel %vm126, %v123, %v822
    %v829 = vsel %vm192, %v828, %v826
    %v831 = vsel %vm194, %v829, 0
    %833 = vmatpush.msra.mxu0 0.0
    %834 = vmatpush.msra.mxu0 0.0
    %835 = vmatpush.msra.mxu0 0.0
    %836 = vmatpush.msra.mxu0 0.0
    %837 = vmatpush.msra.mxu0 0.0
    %838 = vmatpush.msra.mxu0 0.0
    %839 = vmatpush.msra.mxu0 0.0
    %840 = vmatpush.msra.mxu0 %v93
    %841 = vmatpush.msra.mxu0 %v91
    %842 = vmatpush.msra.mxu0 %v89
    %843 = vmatpush.msra.mxu0 %v87
    %844 = vmatpush.msra.mxu0 %v85
    %845 = vmatpush.msra.mxu0 %v83
    %846 = vmatpush.msra.mxu0 %v81
    %847 = vmatpush.msra.mxu0 %v79
    %848 = vmatpush.msra.mxu0 %v77
    %849 = vmatmul.f32.gmra.mxu0 %v831
    %v850 = vpop.f32.mrf.mxu0
    %v851 = vadd.f32 %v109, %v850
    %852 = vdwg.mxu0
    %853 = vmatpush.msra.mxu0 0.0
    %854 = vmatpush.msra.mxu0 0.0
    %855 = vmatpush.msra.mxu0 0.0
    %856 = vmatpush.msra.mxu0 0.0
    %857 = vmatpush.msra.mxu0 0.0
    %858 = vmatpush.msra.mxu0 0.0
    %859 = vmatpush.msra.mxu0 0.0
    %860 = vmatpush.msra.mxu0 %v94
    %861 = vmatpush.msra.mxu0 %v92
    %862 = vmatpush.msra.mxu0 %v90
    %863 = vmatpush.msra.mxu0 %v88
    %864 = vmatpush.msra.mxu0 %v86
    %865 = vmatpush.msra.mxu0 %v84
    %866 = vmatpush.msra.mxu0 %v82
    %867 = vmatpush.msra.mxu0 %v80
    %868 = vmatpush.msra.mxu0 %v78
    %869 = vmatmul.f32.gmra.mxu0 %v831
    %v870 = vpop.f32.mrf.mxu0
    %v871 = vadd.f32 %v110, %v870
    %872 = vdwg.mxu0
    %v873 = vxor.u32 %v851, 2147483648
    %v874 = vxor.u32 %v871, 2147483648
    %v875 = vmul.f32 %v873, 1.442695
    %v876 = vpow.pop %v875
    %v877 = vmul.f32 %v874, 1.442695
    %v878 = vpow.pop %v877
    %v879 = vadd.f32 %v876, 1.0
    %v880 = vadd.f32 %v878, 1.0
    %v881 = vrcp.pop %v879
    %v882 = vmul.f32 %v879, %v881
    %v883 = vsub.f32 1.0, %v882
    %v884 = vmul.f32 %v881, %v883
    %v885 = vadd.f32 %v881, %v884
    %vm886 = vweird.f32 %v879
    %vm887 = vweird.f32 %v881
    %vm888 = vmor %vm886, %vm887
    %v889 = vsel %vm888, %v881, %v885
    %v890 = vand.u32 2147483647, %v879
    %vm891 = vcmp.eq.f32.partialorder %v890, 8.507059e+37
    %v892 = vand.u32 %v879, 2147483648
    %v893 = vor.u32 1.1754944e-38, %v892
    %v894 = vsel %vm891, %v893, %v889
    %v895 = vmul.f32 1.0, %v894
    %v896 = vrcp.pop %v880
    %v897 = vmul.f32 %v880, %v896
    %v898 = vsub.f32 1.0, %v897
    %v899 = vmul.f32 %v896, %v898
    %v900 = vadd.f32 %v896, %v899
    %vm901 = vweird.f32 %v880
    %vm902 = vweird.f32 %v896
    %vm903 = vmor %vm901, %vm902
    %v904 = vsel %vm903, %v896, %v900
    %v905 = vand.u32 2147483647, %v880
    %vm906 = vcmp.eq.f32.partialorder %v905, 8.507059e+37
    %v907 = vand.u32 %v880, 2147483648
    %v908 = vor.u32 1.1754944e-38, %v907
    %v909 = vsel %vm906, %v908, %v904
    %v910 = vmul.f32 1.0, %v909
    %v911 = vtanh.pop %v851
    %v912 = vtanh.pop %v871
    %v913 = vmul.f32 %v895, %v796
    %915 = vrot.lane.b32.xlu0 %v911, 64
    %v916 = vpop.permute.xlu0 %915
    %v918 = vmul.f32 %v895, %v916
    %920 = vrot.lane.b32.xlu0 %v918, 32
    %v921 = vpop.permute.xlu0 %920
    %v923 = vadd.f32 %v913, %v921
    %v924 = vtanh.pop %v923
    %926 = vrot.lane.b32.xlu0 %v924, 64
    %v927 = vpop.permute.xlu0 %926
    %v929 = vmul.f32 %v895, %v927
    %v930 = vmul.f32 %v910, %v813
    %932 = vrot.lane.b32.xlu0 %v912, 64
    %v933 = vpop.permute.xlu0 %932
    %v935 = vmul.f32 %v910, %v933
    %937 = vrot.lane.b32.xlu0 %v935, 32
    %v938 = vpop.permute.xlu0 %937
    %v940 = vadd.f32 %v930, %v938
    %v941 = vtanh.pop %v940
    %943 = vrot.lane.b32.xlu0 %v941, 64
    %v944 = vpop.permute.xlu0 %943
    %v946 = vmul.f32 %v910, %v944
    %948 = vrot.lane.b32.xlu0 %v929, 40
    %v949 = vpop.permute.xlu0 %948
    %952 = vrot.lane.b32.xlu0 %v946, 72
    %v953 = vpop.permute.xlu0 %952
    %v955 = vsel %vm126, %v125, %v949
    %v956 = vsel %vm192, %v955, %v953
    %v958 = vsel %vm194, %v956, 0
    %960 = vmatpush.msra.mxu0 0.0
    %961 = vmatpush.msra.mxu0 0.0
    %962 = vmatpush.msra.mxu0 0.0
    %963 = vmatpush.msra.mxu0 0.0
    %964 = vmatpush.msra.mxu0 0.0
    %965 = vmatpush.msra.mxu0 0.0
    %966 = vmatpush.msra.mxu0 0.0
    %967 = vmatpush.msra.mxu0 %v93
    %968 = vmatpush.msra.mxu0 %v91
    %969 = vmatpush.msra.mxu0 %v89
    %970 = vmatpush.msra.mxu0 %v87
    %971 = vmatpush.msra.mxu0 %v85
    %972 = vmatpush.msra.mxu0 %v83
    %973 = vmatpush.msra.mxu0 %v81
    %974 = vmatpush.msra.mxu0 %v79
    %975 = vmatpush.msra.mxu0 %v77
    %976 = vmatmul.f32.gmra.mxu0 %v958
    %v977 = vpop.f32.mrf.mxu0
    %v978 = vadd.f32 %v109, %v977
    %979 = vdwg.mxu0
    %980 = vmatpush.msra.mxu0 0.0
    %981 = vmatpush.msra.mxu0 0.0
    %982 = vmatpush.msra.mxu0 0.0
    %983 = vmatpush.msra.mxu0 0.0
    %984 = vmatpush.msra.mxu0 0.0
    %985 = vmatpush.msra.mxu0 0.0
    %986 = vmatpush.msra.mxu0 0.0
    %987 = vmatpush.msra.mxu0 %v94
    %988 = vmatpush.msra.mxu0 %v92
    %989 = vmatpush.msra.mxu0 %v90
    %990 = vmatpush.msra.mxu0 %v88
    %991 = vmatpush.msra.mxu0 %v86
    %992 = vmatpush.msra.mxu0 %v84
    %993 = vmatpush.msra.mxu0 %v82
    %994 = vmatpush.msra.mxu0 %v80
    %995 = vmatpush.msra.mxu0 %v78
    %996 = vmatmul.f32.gmra.mxu0 %v958
    %v997 = vpop.f32.mrf.mxu0
    %v998 = vadd.f32 %v110, %v997
    %999 = vdwg.mxu0
    %v1000 = vxor.u32 %v978, 2147483648
    %v1001 = vxor.u32 %v998, 2147483648
    %v1002 = vmul.f32 %v1000, 1.442695
    %v1003 = vpow.pop %v1002
    %v1004 = vmul.f32 %v1001, 1.442695
    %v1005 = vpow.pop %v1004
    %v1006 = vadd.f32 %v1003, 1.0
    %v1007 = vadd.f32 %v1005, 1.0
    %v1008 = vrcp.pop %v1006
    %v1009 = vmul.f32 %v1006, %v1008
    %v1010 = vsub.f32 1.0, %v1009
    %v1011 = vmul.f32 %v1008, %v1010
    %v1012 = vadd.f32 %v1008, %v1011
    %vm1013 = vweird.f32 %v1006
    %vm1014 = vweird.f32 %v1008
    %vm1015 = vmor %vm1013, %vm1014
    %v1016 = vsel %vm1015, %v1008, %v1012
    %v1017 = vand.u32 2147483647, %v1006
    %vm1018 = vcmp.eq.f32.partialorder %v1017, 8.507059e+37
    %v1019 = vand.u32 %v1006, 2147483648
    %v1020 = vor.u32 1.1754944e-38, %v1019
    %v1021 = vsel %vm1018, %v1020, %v1016
    %v1022 = vmul.f32 1.0, %v1021
    %v1023 = vrcp.pop %v1007
    %v1024 = vmul.f32 %v1007, %v1023
    %v1025 = vsub.f32 1.0, %v1024
    %v1026 = vmul.f32 %v1023, %v1025
    %v1027 = vadd.f32 %v1023, %v1026
    %vm1028 = vweird.f32 %v1007
    %vm1029 = vweird.f32 %v1023
    %vm1030 = vmor %vm1028, %vm1029
    %v1031 = vsel %vm1030, %v1023, %v1027
    %v1032 = vand.u32 2147483647, %v1007
    %vm1033 = vcmp.eq.f32.partialorder %v1032, 8.507059e+37
    %v1034 = vand.u32 %v1007, 2147483648
    %v1035 = vor.u32 1.1754944e-38, %v1034
    %v1036 = vsel %vm1033, %v1035, %v1031
    %v1037 = vmul.f32 1.0, %v1036
    %v1038 = vtanh.pop %v978
    %v1039 = vtanh.pop %v998
    %v1040 = vmul.f32 %v1022, %v923
    %1042 = vrot.lane.b32.xlu0 %v1038, 64
    %v1043 = vpop.permute.xlu0 %1042
    %v1045 = vmul.f32 %v1022, %v1043
    %1047 = vrot.lane.b32.xlu0 %v1045, 32
    %v1048 = vpop.permute.xlu0 %1047
    %v1050 = vadd.f32 %v1040, %v1048
    %v1051 = vtanh.pop %v1050
    %1053 = vrot.lane.b32.xlu0 %v1051, 64
    %v1054 = vpop.permute.xlu0 %1053
    %v1056 = vmul.f32 %v1022, %v1054
    %v1057 = vmul.f32 %v1037, %v940
    %1059 = vrot.lane.b32.xlu0 %v1039, 64
    %v1060 = vpop.permute.xlu0 %1059
    %v1062 = vmul.f32 %v1037, %v1060
    %1064 = vrot.lane.b32.xlu0 %v1062, 32
    %v1065 = vpop.permute.xlu0 %1064
    %v1067 = vadd.f32 %v1057, %v1065
    %v1068 = vtanh.pop %v1067
    %1070 = vrot.lane.b32.xlu0 %v1068, 64
    %v1071 = vpop.permute.xlu0 %1070
    %v1073 = vmul.f32 %v1037, %v1071
    %1075 = vrot.lane.b32.xlu0 %v1056, 32
    %v1076 = vpop.permute.xlu0 %1075
    %1079 = vrot.lane.b32.xlu0 %v1073, 64
    %v1080 = vpop.permute.xlu0 %1079
    %vm1082 = vcmask 261120
    %v1083 = vsel %vm1082, %v1076, %v1080
    %vm1084 = vcmask 523264
    %v1086 = vsel %vm1084, %v1083, 0
    %1088 = vmatpush.msra.mxu0 0.0
    %1089 = vmatpush.msra.mxu0 0.0
    %1090 = vmatpush.msra.mxu0 0.0
    %1091 = vmatpush.msra.mxu0 0.0
    %1092 = vmatpush.msra.mxu0 0.0
    %1093 = vmatpush.msra.mxu0 0.0
    %1094 = vmatpush.msra.mxu0 0.0
    %1095 = vmatpush.msra.mxu0 0.0
    %1096 = vmatpush.msra.mxu0 %v102
    %1097 = vmatpush.msra.mxu0 %v101
    %1098 = vmatpush.msra.mxu0 %v100
    %1099 = vmatpush.msra.mxu0 %v99
    %1100 = vmatpush.msra.mxu0 %v98
    %1101 = vmatpush.msra.mxu0 %v97
    %1102 = vmatpush.msra.mxu0 %v96
    %1103 = vmatpush.msra.mxu0 %v95
    %1104 = vmatmul.f32.gmra.mxu0 %v1086
    %v1105 = vpop.f32.mrf.mxu0
    %v1106 = vadd.f32 %v110, %v1105
    %1107 = vdwg.mxu0
    %v1108 = vxor.u32 %v1106, 2147483648
    %v1109 = vmul.f32 %v1108, 1.442695
    %v1110 = vpow.pop %v1109
    %v1111 = vadd.f32 %v1110, 1.0
    %v1112 = vrcp.pop %v1111
    %v1113 = vmul.f32 %v1111, %v1112
    %v1114 = vsub.f32 1.0, %v1113
    %v1115 = vmul.f32 %v1112, %v1114
    %v1116 = vadd.f32 %v1112, %v1115
    %vm1117 = vweird.f32 %v1111
    %vm1118 = vweird.f32 %v1112
    %vm1119 = vmor %vm1117, %vm1118
    %v1120 = vsel %vm1119, %v1112, %v1116
    %v1121 = vand.u32 2147483647, %v1111
    %vm1122 = vcmp.eq.f32.partialorder %v1121, 8.507059e+37
    %v1123 = vand.u32 %v1111, 2147483648
    %v1124 = vor.u32 1.1754944e-38, %v1123
    %v1125 = vsel %vm1122, %v1124, %v1120
    %v1126 = vmul.f32 1.0, %v1125
    %v1127 = vtanh.pop %v1106
    %v1128 = vmul.f32 %v1126, %v1067
    %1130 = vrot.lane.b32.xlu0 %v1127, 64
    %v1131 = vpop.permute.xlu0 %1130
    %v1133 = vmul.f32 %v1126, %v1131
    %1135 = vrot.lane.b32.xlu0 %v1133, 32
    %v1136 = vpop.permute.xlu0 %1135
    %v1138 = vadd.f32 %v1128, %v1136
    %v1139 = vtanh.pop %v1138
    %1141 = vrot.lane.b32.xlu0 %v1139, 64
    %v1142 = vpop.permute.xlu0 %1141
    %v1144 = vmul.f32 %v1126, %v1142
    %1146 = vrot.lane.b32.xlu0 %v1144, 32
    %v1147 = vpop.permute.xlu0 %1146
    %v1149 = vsel %vm1082, %v1147, 0.0
    %1150 = vadd.xlane.f32.xlu0 %v1149
    %v1151 = vpop.xlane.xlu0 %1150
    %v1152 = vrcp.pop 32.0
    %v1153 = vmul.f32 32.0, %v1152
    %v1154 = vsub.f32 1.0, %v1153
    %v1155 = vmul.f32 %v1152, %v1154
    %v1156 = vadd.f32 %v1152, %v1155
    %vm1157 = vweird.f32 %v1152
    %v1158 = vsel %vm1157, %v1152, %v1156
    %v1159 = vmul.f32 %v1151, %v1158
    %v1160 = vsub.f32 %v1144, %v1159
    %v1161 = vmul.f32 %v1160, %v1160
    %1163 = vrot.lane.b32.xlu0 %v1161, 32
    %v1164 = vpop.permute.xlu0 %1163
    %v1166 = vsel %vm1082, %v1164, 0.0
    %1167 = vadd.xlane.f32.xlu0 %v1166
    %v1168 = vpop.xlane.xlu0 %1167
    %v1169 = vmul.f32 %v1168, %v1158
    %v1170 = vadd.f32 %v1169, 1e-05
    %v1171 = vrsqrt.pop %v1170
    %v1172 = vmul.f32 %v1171, %v1170
    %v1173 = vmul.f32 %v1172, %v1171
    %v1174 = vmul.f32 0.5, %v1173
    %v1175 = vsub.f32 1.5, %v1174
    %v1176 = vmul.f32 %v1171, %v1175
    %vm1177 = vweird.f32 %v1170
    %vm1178 = vweird.f32 %v1171
    %vm1179 = vmor %vm1177, %vm1178
    %v1180 = vsel %vm1179, %v1171, %v1176
    %v1181 = vmul.f32 %v1160, %v1180
    %v1182 = vld [vmem:[%s4] sm:$0x1]
    %v1184 = vperm.slane %v1182, 0
    %1185 = vrot.lane.b32.xlu0 %v1184, 96
    %v1186 = vpop.permute.xlu0 %1185
    %v1188 = vmul.f32 %v1181, %v1186
    %v1189 = vld [vmem:[%s5] sm:$0x1]
    %v1191 = vperm.slane %v1189, 0
    %1192 = vrot.lane.b32.xlu0 %v1191, 96
    %v1193 = vpop.permute.xlu0 %1192
    %v1195 = vadd.f32 %v1188, %v1193
    %v1196 = vld [vmem:[%s6] sm:$0xff]
    %v1197 = vld [vmem:[%s6 + $0x8] sm:$0xff]
    %v1198 = vld [vmem:[%s6 + $0x10] sm:$0xff]
    %v1199 = vld [vmem:[%s6 + $0x18] sm:$0xff]
    %v1200 = vld [vmem:[%s7] sm:$0x1]
    %v1202 = vperm.slane %v1200, 0
    %1205 = vrot.lane.b32.xlu0 %v1195, 32
    %v1206 = vpop.permute.xlu0 %1205
    %v1207 = vsel %vm1082, %v1206, 0
    %1209 = vmatpush.msra.mxu0 0.0
    %1210 = vmatpush.msra.mxu0 0.0
    %1211 = vmatpush.msra.mxu0 0.0
    %1212 = vmatpush.msra.mxu0 0.0
    %1213 = vmatpush.msra.mxu0 0.0
    %1214 = vmatpush.msra.mxu0 0.0
    %1215 = vmatpush.msra.mxu0 0.0
    %1216 = vmatpush.msra.mxu0 0.0
    %1217 = vmatpush.msra.mxu0 0.0
    %1218 = vmatpush.msra.mxu0 0.0
    %1219 = vmatpush.msra.mxu0 0.0
    %1220 = vmatpush.msra.mxu0 0.0
    %1221 = vmatpush.msra.mxu0 %v1199
    %1222 = vmatpush.msra.mxu0 %v1198
    %1223 = vmatpush.msra.mxu0 %v1197
    %1224 = vmatpush.msra.mxu0 %v1196
    %1225 = vmatmul.f32.gmra.mxu0 %v1207
    %v1226 = vpop.f32.mrf.mxu0
    %v1227 = vadd.f32 %v1202, %v1226
    %1228 = vdwg.mxu0
    %1229 = vst.msk [vmem:[#allocation8] sm:$0xff] %vm126, %v1227
    // Predicated region
    $region46: #{tpu_custom_call.1} parent=1 // pred_check
      _
    $region47: #{tpu_custom_call.1} parent=1 // pred_check_branch
      %1231 = sbr.rel (0) target = $region49
    $region48: #{tpu_custom_call.1} parent=1 // pred_region
      %1233 = vsyncadd [#allocation4], 0
      %s1235 = sshll.u32 [#allocation8], 4
      %s1236 = int_to_ptr.vmem [resolvable:$true] %s1235
      %s1237 = sshll.u32 %s8, 4
      %s1238 = int_to_ptr.hbm [resolvable:$true] %s1237
      %1240 = dma.vmem_to_hbm [thread:$0]  %s1236, 128, %s1238, [#allocation4]
    $region49: #{tpu_custom_call.1} parent=1 // pred_fallthru
      _
    // Predicated region
    $region50: #{tpu_custom_call.1} parent=1 // pred_check
      _
    $region51: #{tpu_custom_call.1} parent=1 // pred_check_branch
      %1242 = sbr.rel (0) target = $region53
    $region52: #{tpu_custom_call.1} parent=1 // pred_region
      %1244 = dma.done [#allocation4], 128
    $region53: #{tpu_custom_call.1} parent=1 // pred_fallthru
      _
    %1245 = vsyncpa [#allocation3], 1
    %1246 = vsyncpa [#allocation6], 1
    %1247 = vsyncpa [#allocation4], 1

</llo_original>
